<compile_context>
chip_gen: v6e
topology: v6e:2x2x1
jax: 0.10.0
libtpu: 0.0.40
codegen_flags: <defaults>
</compile_context>

<pallas_src>
import jax
import jax.numpy as jnp
from jax.experimental import pallas as pl
from jax.experimental.pallas import tpu as pltpu

DIMS = (784, 512, 256, 128, 64, 10)      # original PyTorch layer widths
PDIMS = (784, 512, 256, 128, 128, 128)   # kernel widths (only 64/10 padded to 128)


def _round_up(x, m):
    return (x + m - 1) // m * m


def _choose_tiling(B):
    """Pick (TB, B_pad): tiles up to ~512 rows, multiple of 16 (bf16 sublane
    packing), and always >= 2 grid steps so both v7x TensorCores get work."""
    n_tiles = max(2, pl.cdiv(B, 512))
    TB = _round_up(pl.cdiv(B, n_tiles), 16)
    return TB, TB * n_tiles


def mlp_kernel(x_ref,
               w1_ref, b1_ref,
               w2_ref, b2_ref,
               w3_ref, b3_ref,
               w4_ref, b4_ref,
               w5_ref, b5_ref,
               o_ref):
    """One batch tile of the fused 5-layer MLP.

    Matmuls run on the MXU with bf16 operands and f32 accumulation; bias-add
    and ReLU stay in f32 (works on every generation incl. v5e). All blocks are
    lane-dense, so loads/stores are unmasked.
    """
    h = jnp.dot(x_ref[...], w1_ref[...], preferred_element_type=jnp.float32) + b1_ref[...]
    h = jnp.maximum(h, 0.0).astype(jnp.bfloat16)

    h = jnp.dot(h, w2_ref[...], preferred_element_type=jnp.float32) + b2_ref[...]
    h = jnp.maximum(h, 0.0).astype(jnp.bfloat16)

    h = jnp.dot(h, w3_ref[...], preferred_element_type=jnp.float32) + b3_ref[...]
    h = jnp.maximum(h, 0.0).astype(jnp.bfloat16)

    h = jnp.dot(h, w4_ref[...], preferred_element_type=jnp.float32) + b4_ref[...]
    h = jnp.maximum(h, 0.0).astype(jnp.bfloat16)

    h = jnp.dot(h, w5_ref[...], preferred_element_type=jnp.float32) + b5_ref[...]
    o_ref[...] = h.astype(jnp.bfloat16)   # (TB, 128) bf16; real logits = cols [:10]


def _prepare_params(params):
    """Zero-pad weights/biases to kernel widths; weights bf16, biases f32."""
    flat = []
    for i, (w, b) in enumerate(params):
        pin, pout = PDIMS[i], PDIMS[i + 1]
        if w.shape == (pin, pout):
            w_p = w
        else:
            w_p = jnp.zeros((pin, pout), jnp.float32).at[: w.shape[0], : w.shape[1]].set(w)
        if b.shape[1] == pout:
            b_p = b.reshape(1, pout)
        else:
            b_p = jnp.zeros((1, pout), jnp.float32).at[:, : b.shape[1]].set(b.reshape(1, -1))
        flat.append(w_p.astype(jnp.bfloat16))
        flat.append(b_p.astype(jnp.float32))
    return flat


def dnn_forward(x_nchw, params):
    """x_nchw: (B, 1, 28, 28) float32. params: list of (W, b), W (in,out), b (1,out)."""
    B = x_nchw.shape[0]
    # nn.Flatten() + bf16 cast BEFORE any padding (single cheap pass over x).
    x_flat = x_nchw.reshape(B, -1).astype(jnp.bfloat16)   # (B, 784)
    assert x_flat.shape[1] == DIMS[0]

    TB, B_pad = _choose_tiling(B)
    n_tiles = B_pad // TB

    if B_pad != B:
        # Batch-only zero pad in bf16 (feature dim left at 784 — no 896 pad).
        x_in = jnp.zeros((B_pad, DIMS[0]), jnp.bfloat16).at[:B].set(x_flat)
    else:
        x_in = x_flat

    flat_params = _prepare_params(params)

    # Activations tiled over the batch grid; weights/biases use constant index
    # maps so they stay resident in VMEM across grid steps.
    in_specs = [pl.BlockSpec((TB, DIMS[0]), lambda i: (i, 0))]
    for li in range(5):
        pin, pout = PDIMS[li], PDIMS[li + 1]
        in_specs.append(pl.BlockSpec((pin, pout), lambda i: (0, 0)))
        in_specs.append(pl.BlockSpec((1, pout), lambda i: (0, 0)))
    out_spec = pl.BlockSpec((TB, PDIMS[-1]), lambda i: (i, 0))

    flops = 2 * B_pad * sum(PDIMS[i] * PDIMS[i + 1] for i in range(5))
    bytes_accessed = (
        int(x_in.size) * 2
        + sum(int(p.size) * p.dtype.itemsize for p in flat_params)
        + B_pad * PDIMS[-1] * 2
    )

    out_padded = pl.pallas_call(
        mlp_kernel,
        out_shape=jax.ShapeDtypeStruct((B_pad, PDIMS[-1]), jnp.bfloat16),
        grid=(n_tiles,),
        in_specs=in_specs,
        out_specs=out_spec,
        compiler_params=pltpu.CompilerParams(
            dimension_semantics=("parallel",),
        ),
        cost_estimate=pl.CostEstimate(
            flops=flops, transcendentals=0, bytes_accessed=bytes_accessed),
    )(x_in, *flat_params)

    return out_padded[:B, : DIMS[-1]].astype(jnp.float32)


def init_params(key):
    """Deterministic Kaiming-like init; W stored (in, out), b (1, out), f32."""
    params = []
    for i in range(len(DIMS) - 1):
        fan_in, fan_out = DIMS[i], DIMS[i + 1]
        key, wk, bk = jax.random.split(key, 3)
        scale = (2.0 / fan_in) ** 0.5
        w = jax.random.normal(wk, (fan_in, fan_out), dtype=jnp.float32) * scale
        b = jax.random.normal(bk, (1, fan_out), dtype=jnp.float32) * 0.01
        params.append((w, b))
    return params


def reference_forward_f32(x_nchw, params):
    """Pure-JAX f32 reference (exact PyTorch semantics)."""
    h = x_nchw.reshape(x_nchw.shape[0], -1)
    for i, (w, b) in enumerate(params):
        h = h @ w + b
        if i < len(params) - 1:
            h = jnp.maximum(h, 0.0)
    return h


def reference_forward_bf16(x_nchw, params):
    """Pure-JAX reference with the same bf16-input / f32-accum / bf16-output
    math as the kernel."""
    h = x_nchw.reshape(x_nchw.shape[0], -1).astype(jnp.bfloat16)
    for i, (w, b) in enumerate(params):
        h = jnp.dot(h, w.astype(jnp.bfloat16),
                    preferred_element_type=jnp.float32) + b
        if i < len(params) - 1:
            h = jnp.maximum(h, 0.0).astype(jnp.bfloat16)
    return h.astype(jnp.bfloat16).astype(jnp.float32)


if __name__ == "__main__":
    key = jax.random.PRNGKey(0)
    key, xk, pk = jax.random.split(key, 3)

    # MNIST-like input implied by the 784-wide first Linear: (B, 1, 28, 28).
    B = 8
    x = jax.random.normal(xk, (B, 1, 28, 28), dtype=jnp.float32)
    params = init_params(pk)

    out = dnn_forward(x, params)
    out = jax.block_until_ready(out)
    assert out.shape == (B, 10), out.shape

    # Tight check vs the bit-equivalent bf16-in / f32-accum / bf16-out reference.
    ref_bf16 = reference_forward_bf16(x, params)
    assert jnp.allclose(out, ref_bf16, atol=3e-2, rtol=1e-2), "mismatch vs bf16 reference"

    # Loose check vs the full-f32 PyTorch-semantics reference (difference is
    # only the intentional bf16 quantization of matmul inputs and the output).
    ref_f32 = reference_forward_f32(x, params)
    assert jnp.allclose(out, ref_f32, atol=0.2, rtol=0.05), "mismatch vs f32 reference"

    print("KERNEL_OK")
</pallas_src>

<mosaic_0001>
module attributes {stable_mosaic.version = 11 : i64} {
  func.func @mlp_kernel(%arg0: i32, %arg1: memref<16x784xbf16, #tpu.memory_space<vmem>>, %arg2: memref<784x512xbf16, #tpu.memory_space<vmem>>, %arg3: memref<1x512xf32, #tpu.memory_space<vmem>>, %arg4: memref<512x256xbf16, #tpu.memory_space<vmem>>, %arg5: memref<1x256xf32, #tpu.memory_space<vmem>>, %arg6: memref<256x128xbf16, #tpu.memory_space<vmem>>, %arg7: memref<1x128xf32, #tpu.memory_space<vmem>>, %arg8: memref<128x128xbf16, #tpu.memory_space<vmem>>, %arg9: memref<1x128xf32, #tpu.memory_space<vmem>>, %arg10: memref<128x128xbf16, #tpu.memory_space<vmem>>, %arg11: memref<1x128xf32, #tpu.memory_space<vmem>>, %arg12: memref<16x128xbf16, #tpu.memory_space<vmem>>) attributes {dimension_semantics = [#tpu.dimension_semantics<parallel>], iteration_bounds = array<i64: 2>, scalar_prefetch = 0 : i64, scratch_operands = 0 : i64, tpu.core_type = #tpu.core_type<tc>, window_params = [{transform_indices = @transform_0, window_bounds = array<i64: 16, 784>}, {pipeline_mode = #tpu.pipeline_mode<synchronous>, transform_indices = @transform_1, window_bounds = array<i64: 784, 512>}, {pipeline_mode = #tpu.pipeline_mode<synchronous>, transform_indices = @transform_2, window_bounds = array<i64: 1, 512>}, {pipeline_mode = #tpu.pipeline_mode<synchronous>, transform_indices = @transform_3, window_bounds = array<i64: 512, 256>}, {pipeline_mode = #tpu.pipeline_mode<synchronous>, transform_indices = @transform_4, window_bounds = array<i64: 1, 256>}, {pipeline_mode = #tpu.pipeline_mode<synchronous>, transform_indices = @transform_5, window_bounds = array<i64: 256, 128>}, {pipeline_mode = #tpu.pipeline_mode<synchronous>, transform_indices = @transform_6, window_bounds = array<i64: 1, 128>}, {pipeline_mode = #tpu.pipeline_mode<synchronous>, transform_indices = @transform_7, window_bounds = array<i64: 128, 128>}, {pipeline_mode = #tpu.pipeline_mode<synchronous>, transform_indices = @transform_8, window_bounds = array<i64: 1, 128>}, {pipeline_mode = #tpu.pipeline_mode<synchronous>, transform_indices = @transform_9, window_bounds = array<i64: 128, 128>}, {pipeline_mode = #tpu.pipeline_mode<synchronous>, transform_indices = @transform_10, window_bounds = array<i64: 1, 128>}, {transform_indices = @transform_11, window_bounds = array<i64: 16, 128>}]} {
    %c0 = arith.constant 0 : index
    %c0_0 = arith.constant 0 : index
    %0 = vector.load %arg1[%c0, %c0_0] : memref<16x784xbf16, #tpu.memory_space<vmem>>, vector<16x784xbf16>
    %c0_1 = arith.constant 0 : index
    %c0_2 = arith.constant 0 : index
    %1 = vector.load %arg2[%c0_1, %c0_2] : memref<784x512xbf16, #tpu.memory_space<vmem>>, vector<784x512xbf16>
    %cst = arith.constant dense<0.000000e+00> : vector<16x512xf32>
    %2 = tpu.matmul %0, %1, %cst {dimension_numbers = #tpu.dot_dimension_numbers<[1], [0], [0], [1], [0, 0, 1, 1], [], []>} : vector<16x784xbf16>, vector<784x512xbf16>, vector<16x512xf32> -> vector<16x512xf32>
    %c0_3 = arith.constant 0 : index
    %c0_4 = arith.constant 0 : index
    %3 = vector.load %arg3[%c0_3, %c0_4] : memref<1x512xf32, #tpu.memory_space<vmem>>, vector<1x512xf32>
    %4 = vector.broadcast %3 : vector<1x512xf32> to vector<16x512xf32>
    %5 = arith.addf %2, %4 : vector<16x512xf32>
    %cst_5 = arith.constant 0.000000e+00 : f32
    %6 = vector.broadcast %cst_5 : f32 to vector<16x512xf32>
    %7 = arith.maximumf %5, %6 : vector<16x512xf32>
    %8 = arith.truncf %7 : vector<16x512xf32> to vector<16x512xbf16>
    %c0_6 = arith.constant 0 : index
    %c0_7 = arith.constant 0 : index
    %9 = vector.load %arg4[%c0_6, %c0_7] : memref<512x256xbf16, #tpu.memory_space<vmem>>, vector<512x256xbf16>
    %cst_8 = arith.constant dense<0.000000e+00> : vector<16x256xf32>
    %10 = tpu.matmul %8, %9, %cst_8 {dimension_numbers = #tpu.dot_dimension_numbers<[1], [0], [0], [1], [0, 0, 1, 1], [], []>} : vector<16x512xbf16>, vector<512x256xbf16>, vector<16x256xf32> -> vector<16x256xf32>
    %c0_9 = arith.constant 0 : index
    %c0_10 = arith.constant 0 : index
    %11 = vector.load %arg5[%c0_9, %c0_10] : memref<1x256xf32, #tpu.memory_space<vmem>>, vector<1x256xf32>
    %12 = vector.broadcast %11 : vector<1x256xf32> to vector<16x256xf32>
    %13 = arith.addf %10, %12 : vector<16x256xf32>
    %cst_11 = arith.constant 0.000000e+00 : f32
    %14 = vector.broadcast %cst_11 : f32 to vector<16x256xf32>
    %15 = arith.maximumf %13, %14 : vector<16x256xf32>
    %16 = arith.truncf %15 : vector<16x256xf32> to vector<16x256xbf16>
    %c0_12 = arith.constant 0 : index
    %c0_13 = arith.constant 0 : index
    %17 = vector.load %arg6[%c0_12, %c0_13] : memref<256x128xbf16, #tpu.memory_space<vmem>>, vector<256x128xbf16>
    %cst_14 = arith.constant dense<0.000000e+00> : vector<16x128xf32>
    %18 = tpu.matmul %16, %17, %cst_14 {dimension_numbers = #tpu.dot_dimension_numbers<[1], [0], [0], [1], [0, 0, 1, 1], [], []>} : vector<16x256xbf16>, vector<256x128xbf16>, vector<16x128xf32> -> vector<16x128xf32>
    %c0_15 = arith.constant 0 : index
    %c0_16 = arith.constant 0 : index
    %19 = vector.load %arg7[%c0_15, %c0_16] : memref<1x128xf32, #tpu.memory_space<vmem>>, vector<1x128xf32>
    %20 = vector.broadcast %19 : vector<1x128xf32> to vector<16x128xf32>
    %21 = arith.addf %18, %20 : vector<16x128xf32>
    %cst_17 = arith.constant 0.000000e+00 : f32
    %22 = vector.broadcast %cst_17 : f32 to vector<16x128xf32>
    %23 = arith.maximumf %21, %22 : vector<16x128xf32>
    %24 = arith.truncf %23 : vector<16x128xf32> to vector<16x128xbf16>
    %c0_18 = arith.constant 0 : index
    %c0_19 = arith.constant 0 : index
    %25 = vector.load %arg8[%c0_18, %c0_19] : memref<128x128xbf16, #tpu.memory_space<vmem>>, vector<128x128xbf16>
    %cst_20 = arith.constant dense<0.000000e+00> : vector<16x128xf32>
    %26 = tpu.matmul %24, %25, %cst_20 {dimension_numbers = #tpu.dot_dimension_numbers<[1], [0], [0], [1], [0, 0, 1, 1], [], []>} : vector<16x128xbf16>, vector<128x128xbf16>, vector<16x128xf32> -> vector<16x128xf32>
    %c0_21 = arith.constant 0 : index
    %c0_22 = arith.constant 0 : index
    %27 = vector.load %arg9[%c0_21, %c0_22] : memref<1x128xf32, #tpu.memory_space<vmem>>, vector<1x128xf32>
    %28 = vector.broadcast %27 : vector<1x128xf32> to vector<16x128xf32>
    %29 = arith.addf %26, %28 : vector<16x128xf32>
    %cst_23 = arith.constant 0.000000e+00 : f32
    %30 = vector.broadcast %cst_23 : f32 to vector<16x128xf32>
    %31 = arith.maximumf %29, %30 : vector<16x128xf32>
    %32 = arith.truncf %31 : vector<16x128xf32> to vector<16x128xbf16>
    %c0_24 = arith.constant 0 : index
    %c0_25 = arith.constant 0 : index
    %33 = vector.load %arg10[%c0_24, %c0_25] : memref<128x128xbf16, #tpu.memory_space<vmem>>, vector<128x128xbf16>
    %cst_26 = arith.constant dense<0.000000e+00> : vector<16x128xf32>
    %34 = tpu.matmul %32, %33, %cst_26 {dimension_numbers = #tpu.dot_dimension_numbers<[1], [0], [0], [1], [0, 0, 1, 1], [], []>} : vector<16x128xbf16>, vector<128x128xbf16>, vector<16x128xf32> -> vector<16x128xf32>
    %c0_27 = arith.constant 0 : index
    %c0_28 = arith.constant 0 : index
    %35 = vector.load %arg11[%c0_27, %c0_28] : memref<1x128xf32, #tpu.memory_space<vmem>>, vector<1x128xf32>
    %36 = vector.broadcast %35 : vector<1x128xf32> to vector<16x128xf32>
    %37 = arith.addf %34, %36 : vector<16x128xf32>
    %38 = arith.truncf %37 : vector<16x128xf32> to vector<16x128xbf16>
    %c0_29 = arith.constant 0 : index
    %c0_30 = arith.constant 0 : index
    %39 = vector.load %arg12[%c0_29, %c0_30] : memref<16x128xbf16, #tpu.memory_space<vmem>>, vector<16x128xbf16>
    tpu.vector_store %arg12[%c0_29, %c0_30], %38 {strides = array<i32>} : memref<16x128xbf16, #tpu.memory_space<vmem>>, vector<16x128xbf16>,
    return
  }
  func.func @transform_0(%arg0: i32) -> (i32, i32) {
    %c0_i32 = arith.constant 0 : i32
    %c0_i32_0 = arith.constant 0 : i32
    return %arg0, %c0_i32 : i32, i32
  }
  func.func @transform_1(%arg0: i32) -> (i32, i32) {
    %c0_i32 = arith.constant 0 : i32
    %c0_i32_0 = arith.constant 0 : i32
    %c0_i32_1 = arith.constant 0 : i32
    return %c0_i32, %c0_i32_0 : i32, i32
  }
  func.func @transform_2(%arg0: i32) -> (i32, i32) {
    %c0_i32 = arith.constant 0 : i32
    %c0_i32_0 = arith.constant 0 : i32
    %c0_i32_1 = arith.constant 0 : i32
    return %c0_i32, %c0_i32_0 : i32, i32
  }
  func.func @transform_3(%arg0: i32) -> (i32, i32) {
    %c0_i32 = arith.constant 0 : i32
    %c0_i32_0 = arith.constant 0 : i32
    %c0_i32_1 = arith.constant 0 : i32
    return %c0_i32, %c0_i32_0 : i32, i32
  }
  func.func @transform_4(%arg0: i32) -> (i32, i32) {
    %c0_i32 = arith.constant 0 : i32
    %c0_i32_0 = arith.constant 0 : i32
    %c0_i32_1 = arith.constant 0 : i32
    return %c0_i32, %c0_i32_0 : i32, i32
  }
  func.func @transform_5(%arg0: i32) -> (i32, i32) {
    %c0_i32 = arith.constant 0 : i32
    %c0_i32_0 = arith.constant 0 : i32
    %c0_i32_1 = arith.constant 0 : i32
    return %c0_i32, %c0_i32_0 : i32, i32
  }
  func.func @transform_6(%arg0: i32) -> (i32, i32) {
    %c0_i32 = arith.constant 0 : i32
    %c0_i32_0 = arith.constant 0 : i32
    %c0_i32_1 = arith.constant 0 : i32
    return %c0_i32, %c0_i32_0 : i32, i32
  }
  func.func @transform_7(%arg0: i32) -> (i32, i32) {
    %c0_i32 = arith.constant 0 : i32
    %c0_i32_0 = arith.constant 0 : i32
    %c0_i32_1 = arith.constant 0 : i32
    return %c0_i32, %c0_i32_0 : i32, i32
  }
  func.func @transform_8(%arg0: i32) -> (i32, i32) {
    %c0_i32 = arith.constant 0 : i32
    %c0_i32_0 = arith.constant 0 : i32
    %c0_i32_1 = arith.constant 0 : i32
    return %c0_i32, %c0_i32_0 : i32, i32
  }
  func.func @transform_9(%arg0: i32) -> (i32, i32) {
    %c0_i32 = arith.constant 0 : i32
    %c0_i32_0 = arith.constant 0 : i32
    %c0_i32_1 = arith.constant 0 : i32
    return %c0_i32, %c0_i32_0 : i32, i32
  }
  func.func @transform_10(%arg0: i32) -> (i32, i32) {
    %c0_i32 = arith.constant 0 : i32
    %c0_i32_0 = arith.constant 0 : i32
    %c0_i32_1 = arith.constant 0 : i32
    return %c0_i32, %c0_i32_0 : i32, i32
  }
  func.func @transform_11(%arg0: i32) -> (i32, i32) {
    %c0_i32 = arith.constant 0 : i32
    %c0_i32_0 = arith.constant 0 : i32
    return %arg0, %c0_i32 : i32, i32
  }
}

</mosaic_0001>

<llo_original>
// kernel: tpu_custom_call.1
$region0: #{tpu_custom_call.1}
  #allocation0 [shape = 'u32[]', space=smem, size = 0x4, offset = 0x4, fixed_abs, tag = 'smem constant byte address 0x4 - core index']
  #allocation1 [shape = 'u32[144,128]{1,0:T(1,128)}', space=vmem, size = 0x12000, scoped, tag = 'internal scratch']
  %s0 = inlined_call_operand.hbm [shape: bf16[32,784], index: 0, kind: input, shape index: {}]
  %s1 = inlined_call_operand.hbm [shape: bf16[784,512], index: 1, kind: input, shape index: {}]
  %s2 = inlined_call_operand.hbm [shape: f32[1,512], index: 2, kind: input, shape index: {}]
  %s3 = inlined_call_operand.hbm [shape: bf16[512,256], index: 3, kind: input, shape index: {}]
  %s4 = inlined_call_operand.vmem [shape: f32[1,256], index: 4, kind: input, shape index: {}]
  %s5 = inlined_call_operand.hbm [shape: bf16[256,128], index: 5, kind: input, shape index: {}]
  %s6 = inlined_call_operand.vmem [shape: f32[1,128], index: 6, kind: input, shape index: {}]
  %s7 = inlined_call_operand.hbm [shape: bf16[128,128], index: 7, kind: input, shape index: {}]
  %s8 = inlined_call_operand.vmem [shape: f32[1,128], index: 8, kind: input, shape index: {}]
  %s9 = inlined_call_operand.hbm [shape: bf16[128,128], index: 9, kind: input, shape index: {}]
  %s10 = inlined_call_operand.vmem [shape: f32[1,128], index: 10, kind: input, shape index: {}]
  %s11 = inlined_call_operand.hbm [shape: bf16[32,128], index: 11, kind: output, shape index: {}]
  %s12 = sld [smem:[#allocation0]]
  $region105: #{tpu_custom_call.1} parent=0
    _
  %s14 = ssub.s32 1, %s12
  %s15 = scalar_select 0, %s14, %s12
  $region1: #{tpu_custom_call.1} parent=0
    #allocation2 [shape = 'u8[57344]{0}', space=vmem, size = 0xe000, scoped, tag = 'input window, operand 0']
    #allocation3 [shape = 's32[2]{0}', space=sflag, size = 0x8, scoped, tag = 'scoped memory for tpu_custom_call.1']
    #allocation4 [shape = 's32[2]{0}', space=sflag, size = 0x8, scoped, tag = 'scoped memory for tpu_custom_call.1']
    #allocation5 [shape = 'u8[802816]{0}', space=vmem, size = 0xc4000, scoped, tag = 'input window, operand 1, single buffered']
    #allocation6 [shape = 's32[1]{0}', space=sflag, size = 0x4, scoped, tag = 'scoped memory for tpu_custom_call.1']
    #allocation7 [shape = 'u8[2048]{0}', space=vmem, size = 0x800, scoped, tag = 'input window, operand 2, single buffered']
    #allocation8 [shape = 'u8[262144]{0}', space=vmem, size = 0x40000, scoped, tag = 'input window, operand 3, single buffered']
    #allocation9 [shape = 's32[1]{0}', space=sflag, size = 0x4, scoped, tag = 'scoped memory for tpu_custom_call.1']
    #allocation10 [shape = 'u8[65536]{0}', space=vmem, size = 0x10000, scoped, tag = 'input window, operand 5, single buffered']
    #allocation11 [shape = 'u8[32768]{0}', space=vmem, size = 0x8000, scoped, tag = 'input window, operand 7, single buffered']
    #allocation12 [shape = 's32[1]{0}', space=sflag, size = 0x4, scoped, tag = 'scoped memory for tpu_custom_call.1']
    #allocation13 [shape = 'u8[32768]{0}', space=vmem, size = 0x8000, scoped, tag = 'input window, operand 9, single buffered']
    #allocation14 [shape = 'u8[8192]{0}', space=vmem, size = 0x2000, scoped, tag = 'output window, operand 0']
    %16 = vsyncpa [#allocation3], 0
    %s17 = scalar_lea.sflag [#allocation3], 1
    %18 = vsyncpa %s17, 0
    %19 = vsyncpa [#allocation6], 0
    %20 = vsyncpa [#allocation9], 0
    %21 = vsyncpa [#allocation12], 0
    %22 = vsyncpa [#allocation4], 0
    %s23 = scalar_lea.sflag [#allocation4], 1
    %24 = vsyncpa %s23, 0
    loop: start=0, step=1, limit=4
    $region2: #{tpu_custom_call.1} parent=1 // loop_pre_header
      _
    $region3: #{tpu_custom_call.1} parent=1 // loop_header
      %s26 = sphi 0, %s30
      %p27 = scmp.ge.s32.totalorder %s26, 4
      %s36 = sphi 0, %s38
      %s39 = sphi 0, %s36
      %s40 = sphi 0, %s39
      %s56 = sphi 0, %s40
      %s60 = sphi 0, %s60
      %s62 = sphi 0, %s60
      %s63 = sphi 0, %s62
      %s77 = sphi 0, %s63
      %s81 = sphi 0, %s81
      %s83 = sphi 0, %s81
      %s84 = sphi 0, %s83
      %s98 = sphi 0, %s84
      %s102 = sphi 0, %s102
      %s104 = sphi 0, %s102
      %s105 = sphi 0, %s104
      %s119 = sphi 0, %s105
      %s123 = sphi 0, %s123
      %s125 = sphi 0, %s123
      %s126 = sphi 0, %s125
      %s140 = sphi 0, %s126
      %s144 = sphi 0, %s144
      %s146 = sphi 0, %s144
      %s147 = sphi 0, %s146
      %s161 = sphi 0, %s147
      %s165 = sphi 0, %s165
      %s167 = sphi 0, %s165
      %s168 = sphi 0, %s167
      %s182 = sphi 0, %s168
      %s186 = sphi 0, %s186
      %s188 = sphi 0, %s186
      %s189 = sphi 0, %s188
      %s203 = sphi 0, %s189
      %s207 = sphi 0, %s207
      %s209 = sphi 0, %s207
      %s210 = sphi 0, %s209
      %s224 = sphi 0, %s210
      %s228 = sphi 0, %s228
      %s230 = sphi 0, %s228
      %s231 = sphi 0, %s230
      %s245 = sphi 0, %s231
      %s249 = sphi 0, %s249
      %s251 = sphi 0, %s249
      %s252 = sphi 0, %s251
      %s266 = sphi 0, %s252
      %s272 = sphi 0, %s274
      %s275 = sphi 0, %s272
      %s276 = sphi 0, %s275
      %s292 = sphi 0, %s276
    $region4: #{tpu_custom_call.1} parent=1 // loop_header_branch
      %29 = sbr.rel (%p27) target = $region8
    $region5: #{tpu_custom_call.1} parent=1 // loop_body
      %s31 = ssub.s32 %s26, 1
      %s32 = ssub.s32 %s26, 2
      %s33 = sadd.s32 %s26, 1
      %s34 = ssub.s32 %s26, %s33
      %p35 = scmp.eq.s32.totalorder %s34, 0
      %s37 = sadd.s32 %s36, 1
      %s38 = scalar_select %p35, %s36, %s37
      %p41 = pneg %p35
      %p42 = scmp.eq.s32.totalorder %s26, 1
      %p43 = por %p41, %p42
      %p44 = scmp.ne.s32.totalorder %s36, %s39
      %p45 = scmp.eq.s32.totalorder %s26, 0
      %p46 = por %p44, %p45
      %p47 = scmp.ne.s32.totalorder %s36, %s39
      %p48 = scmp.eq.s32.totalorder %s31, 1
      %p49 = por %p47, %p48
      %p50 = scmp.ne.s32.totalorder %s39, %s40
      %p51 = scmp.eq.s32.totalorder %s31, 0
      %p52 = por %p50, %p51
      %p53 = scmp.ne.s32.totalorder %s39, %s40
      %p54 = scmp.eq.s32.totalorder %s32, 1
      %p55 = por %p53, %p54
      %p57 = scmp.ne.s32.totalorder %s40, %s56
      %p58 = scmp.eq.s32.totalorder %s32, 0
      %p59 = por %p57, %p58
      %s61 = sadd.s32 %s60, 1
      %p64 = scmp.eq.s32.totalorder %s26, 1
      %p65 = scmp.ne.s32.totalorder %s60, %s62
      %p66 = scmp.eq.s32.totalorder %s26, 0
      %p67 = por %p65, %p66
      %p68 = scmp.ne.s32.totalorder %s60, %s62
      %p69 = scmp.eq.s32.totalorder %s31, 1
      %p70 = por %p68, %p69
      %p71 = scmp.ne.s32.totalorder %s62, %s63
      %p72 = scmp.eq.s32.totalorder %s31, 0
      %p73 = por %p71, %p72
      %p74 = scmp.ne.s32.totalorder %s62, %s63
      %p75 = scmp.eq.s32.totalorder %s32, 1
      %p76 = por %p74, %p75
      %p78 = scmp.ne.s32.totalorder %s63, %s77
      %p79 = scmp.eq.s32.totalorder %s32, 0
      %p80 = por %p78, %p79
      %s82 = sadd.s32 %s81, 1
      %p85 = scmp.eq.s32.totalorder %s26, 1
      %p86 = scmp.ne.s32.totalorder %s81, %s83
      %p87 = scmp.eq.s32.totalorder %s26, 0
      %p88 = por %p86, %p87
      %p89 = scmp.ne.s32.totalorder %s81, %s83
      %p90 = scmp.eq.s32.totalorder %s31, 1
      %p91 = por %p89, %p90
      %p92 = scmp.ne.s32.totalorder %s83, %s84
      %p93 = scmp.eq.s32.totalorder %s31, 0
      %p94 = por %p92, %p93
      %p95 = scmp.ne.s32.totalorder %s83, %s84
      %p96 = scmp.eq.s32.totalorder %s32, 1
      %p97 = por %p95, %p96
      %p99 = scmp.ne.s32.totalorder %s84, %s98
      %p100 = scmp.eq.s32.totalorder %s32, 0
      %p101 = por %p99, %p100
      %s103 = sadd.s32 %s102, 1
      %p106 = scmp.eq.s32.totalorder %s26, 1
      %p107 = scmp.ne.s32.totalorder %s102, %s104
      %p108 = scmp.eq.s32.totalorder %s26, 0
      %p109 = por %p107, %p108
      %p110 = scmp.ne.s32.totalorder %s102, %s104
      %p111 = scmp.eq.s32.totalorder %s31, 1
      %p112 = por %p110, %p111
      %p113 = scmp.ne.s32.totalorder %s104, %s105
      %p114 = scmp.eq.s32.totalorder %s31, 0
      %p115 = por %p113, %p114
      %p116 = scmp.ne.s32.totalorder %s104, %s105
      %p117 = scmp.eq.s32.totalorder %s32, 1
      %p118 = por %p116, %p117
      %p120 = scmp.ne.s32.totalorder %s105, %s119
      %p121 = scmp.eq.s32.totalorder %s32, 0
      %p122 = por %p120, %p121
      %s124 = sadd.s32 %s123, 1
      %p127 = scmp.eq.s32.totalorder %s26, 1
      %p128 = scmp.ne.s32.totalorder %s123, %s125
      %p129 = scmp.eq.s32.totalorder %s26, 0
      %p130 = por %p128, %p129
      %p131 = scmp.ne.s32.totalorder %s123, %s125
      %p132 = scmp.eq.s32.totalorder %s31, 1
      %p133 = por %p131, %p132
      %p134 = scmp.ne.s32.totalorder %s125, %s126
      %p135 = scmp.eq.s32.totalorder %s31, 0
      %p136 = por %p134, %p135
      %p137 = scmp.ne.s32.totalorder %s125, %s126
      %p138 = scmp.eq.s32.totalorder %s32, 1
      %p139 = por %p137, %p138
      %p141 = scmp.ne.s32.totalorder %s126, %s140
      %p142 = scmp.eq.s32.totalorder %s32, 0
      %p143 = por %p141, %p142
      %s145 = sadd.s32 %s144, 1
      %p148 = scmp.eq.s32.totalorder %s26, 1
      %p149 = scmp.ne.s32.totalorder %s144, %s146
      %p150 = scmp.eq.s32.totalorder %s26, 0
      %p151 = por %p149, %p150
      %p152 = scmp.ne.s32.totalorder %s144, %s146
      %p153 = scmp.eq.s32.totalorder %s31, 1
      %p154 = por %p152, %p153
      %p155 = scmp.ne.s32.totalorder %s146, %s147
      %p156 = scmp.eq.s32.totalorder %s31, 0
      %p157 = por %p155, %p156
      %p158 = scmp.ne.s32.totalorder %s146, %s147
      %p159 = scmp.eq.s32.totalorder %s32, 1
      %p160 = por %p158, %p159
      %p162 = scmp.ne.s32.totalorder %s147, %s161
      %p163 = scmp.eq.s32.totalorder %s32, 0
      %p164 = por %p162, %p163
      %s166 = sadd.s32 %s165, 1
      %p169 = scmp.eq.s32.totalorder %s26, 1
      %p170 = scmp.ne.s32.totalorder %s165, %s167
      %p171 = scmp.eq.s32.totalorder %s26, 0
      %p172 = por %p170, %p171
      %p173 = scmp.ne.s32.totalorder %s165, %s167
      %p174 = scmp.eq.s32.totalorder %s31, 1
      %p175 = por %p173, %p174
      %p176 = scmp.ne.s32.totalorder %s167, %s168
      %p177 = scmp.eq.s32.totalorder %s31, 0
      %p178 = por %p176, %p177
      %p179 = scmp.ne.s32.totalorder %s167, %s168
      %p180 = scmp.eq.s32.totalorder %s32, 1
      %p181 = por %p179, %p180
      %p183 = scmp.ne.s32.totalorder %s168, %s182
      %p184 = scmp.eq.s32.totalorder %s32, 0
      %p185 = por %p183, %p184
      %s187 = sadd.s32 %s186, 1
      %p190 = scmp.eq.s32.totalorder %s26, 1
      %p191 = scmp.ne.s32.totalorder %s186, %s188
      %p192 = scmp.eq.s32.totalorder %s26, 0
      %p193 = por %p191, %p192
      %p194 = scmp.ne.s32.totalorder %s186, %s188
      %p195 = scmp.eq.s32.totalorder %s31, 1
      %p196 = por %p194, %p195
      %p197 = scmp.ne.s32.totalorder %s188, %s189
      %p198 = scmp.eq.s32.totalorder %s31, 0
      %p199 = por %p197, %p198
      %p200 = scmp.ne.s32.totalorder %s188, %s189
      %p201 = scmp.eq.s32.totalorder %s32, 1
      %p202 = por %p200, %p201
      %p204 = scmp.ne.s32.totalorder %s189, %s203
      %p205 = scmp.eq.s32.totalorder %s32, 0
      %p206 = por %p204, %p205
      %s208 = sadd.s32 %s207, 1
      %p211 = scmp.eq.s32.totalorder %s26, 1
      %p212 = scmp.ne.s32.totalorder %s207, %s209
      %p213 = scmp.eq.s32.totalorder %s26, 0
      %p214 = por %p212, %p213
      %p215 = scmp.ne.s32.totalorder %s207, %s209
      %p216 = scmp.eq.s32.totalorder %s31, 1
      %p217 = por %p215, %p216
      %p218 = scmp.ne.s32.totalorder %s209, %s210
      %p219 = scmp.eq.s32.totalorder %s31, 0
      %p220 = por %p218, %p219
      %p221 = scmp.ne.s32.totalorder %s209, %s210
      %p222 = scmp.eq.s32.totalorder %s32, 1
      %p223 = por %p221, %p222
      %p225 = scmp.ne.s32.totalorder %s210, %s224
      %p226 = scmp.eq.s32.totalorder %s32, 0
      %p227 = por %p225, %p226
      %s229 = sadd.s32 %s228, 1
      %p232 = scmp.eq.s32.totalorder %s26, 1
      %p233 = scmp.ne.s32.totalorder %s228, %s230
      %p234 = scmp.eq.s32.totalorder %s26, 0
      %p235 = por %p233, %p234
      %p236 = scmp.ne.s32.totalorder %s228, %s230
      %p237 = scmp.eq.s32.totalorder %s31, 1
      %p238 = por %p236, %p237
      %p239 = scmp.ne.s32.totalorder %s230, %s231
      %p240 = scmp.eq.s32.totalorder %s31, 0
      %p241 = por %p239, %p240
      %p242 = scmp.ne.s32.totalorder %s230, %s231
      %p243 = scmp.eq.s32.totalorder %s32, 1
      %p244 = por %p242, %p243
      %p246 = scmp.ne.s32.totalorder %s231, %s245
      %p247 = scmp.eq.s32.totalorder %s32, 0
      %p248 = por %p246, %p247
      %s250 = sadd.s32 %s249, 1
      %p253 = scmp.eq.s32.totalorder %s26, 1
      %p254 = scmp.ne.s32.totalorder %s249, %s251
      %p255 = scmp.eq.s32.totalorder %s26, 0
      %p256 = por %p254, %p255
      %p257 = scmp.ne.s32.totalorder %s249, %s251
      %p258 = scmp.eq.s32.totalorder %s31, 1
      %p259 = por %p257, %p258
      %p260 = scmp.ne.s32.totalorder %s251, %s252
      %p261 = scmp.eq.s32.totalorder %s31, 0
      %p262 = por %p260, %p261
      %p263 = scmp.ne.s32.totalorder %s251, %s252
      %p264 = scmp.eq.s32.totalorder %s32, 1
      %p265 = por %p263, %p264
      %p267 = scmp.ne.s32.totalorder %s252, %s266
      %p268 = scmp.eq.s32.totalorder %s32, 0
      %p269 = por %p267, %p268
      %s270 = ssub.s32 %s26, %s33
      %p271 = scmp.eq.s32.totalorder %s270, 0
      %s273 = sadd.s32 %s272, 1
      %s274 = scalar_select %p271, %s272, %s273
      %p277 = pneg %p271
      %p278 = scmp.eq.s32.totalorder %s26, 1
      %p279 = por %p277, %p278
      %p280 = scmp.ne.s32.totalorder %s272, %s275
      %p281 = scmp.eq.s32.totalorder %s26, 0
      %p282 = por %p280, %p281
      %p283 = scmp.ne.s32.totalorder %s272, %s275
      %p284 = scmp.eq.s32.totalorder %s31, 1
      %p285 = por %p283, %p284
      %p286 = scmp.ne.s32.totalorder %s275, %s276
      %p287 = scmp.eq.s32.totalorder %s31, 0
      %p288 = por %p286, %p287
      %p289 = scmp.ne.s32.totalorder %s275, %s276
      %p290 = scmp.eq.s32.totalorder %s32, 1
      %p291 = por %p289, %p290
      %p293 = scmp.ne.s32.totalorder %s276, %s292
      %p294 = scmp.eq.s32.totalorder %s32, 0
      %p295 = por %p293, %p294
      %p296 = scmp.le.s32.totalorder 1, %s26
      %p297 = scmp.lt.s32.totalorder %s26, 3
      %p298 = pnand %p296, %p297
      %p299 = pneg %p298
      // Predicated region
      $region9: #{tpu_custom_call.1} parent=5 // pred_check
        _
      $region10: #{tpu_custom_call.1} parent=5 // pred_check_branch
        %301 = sbr.rel (%p298) target = $region12
      $region11: #{tpu_custom_call.1} parent=5 // pred_region
        %s302 = ssub.s32 %s26, 1
        // Predicated region
        $region13: #{tpu_custom_call.1} parent=11 // pred_check
          %p303 = pneg %p73
        $region14: #{tpu_custom_call.1} parent=11 // pred_check_branch
          %305 = sbr.rel (%p303) target = $region16
        $region15: #{tpu_custom_call.1} parent=11 // pred_region
          %s307 = ssub.s32 25088, 25088
          %308 = vsyncadd [#allocation6], %s307
          %s309 = sshll.u32 [#allocation5], 4
          %s310 = int_to_ptr.vmem [resolvable:$true] %s309
          %315 = dma.hbm_to_vmem [thread:$0]  %s1, 25088, %s310, [#allocation6], 256, 256, 16
        $region16: #{tpu_custom_call.1} parent=11 // pred_fallthru
          _
        // Predicated region
        $region17: #{tpu_custom_call.1} parent=11 // pred_check
          %p316 = pneg %p94
        $region18: #{tpu_custom_call.1} parent=11 // pred_check_branch
          %318 = sbr.rel (%p316) target = $region20
        $region19: #{tpu_custom_call.1} parent=11 // pred_region
          %s320 = ssub.s32 64, 64
          %321 = vsyncadd [#allocation6], %s320
          %s323 = sshll.u32 [#allocation7], 4
          %s324 = int_to_ptr.vmem [resolvable:$true] %s323
          %326 = dma.hbm_to_vmem [thread:$0]  %s2, 64, %s324, [#allocation6]
        $region20: #{tpu_custom_call.1} parent=11 // pred_fallthru
          _
        // Predicated region
        $region21: #{tpu_custom_call.1} parent=11 // pred_check
          %p327 = pneg %p115
        $region22: #{tpu_custom_call.1} parent=11 // pred_check_branch
          %329 = sbr.rel (%p327) target = $region24
        $region23: #{tpu_custom_call.1} parent=11 // pred_region
          %s331 = ssub.s32 8192, 8192
          %332 = vsyncadd [#allocation9], %s331
          %s333 = sshll.u32 [#allocation8], 4
          %s334 = int_to_ptr.vmem [resolvable:$true] %s333
          %339 = dma.hbm_to_vmem [thread:$0]  %s3, 8192, %s334, [#allocation9], 128, 128, 8
        $region24: #{tpu_custom_call.1} parent=11 // pred_fallthru
          _
        // Predicated region
        $region25: #{tpu_custom_call.1} parent=11 // pred_check
          %p340 = pneg %p136
        $region26: #{tpu_custom_call.1} parent=11 // pred_check_branch
          %342 = sbr.rel (%p340) target = $region28
        $region27: #{tpu_custom_call.1} parent=11 // pred_region
          _
        $region28: #{tpu_custom_call.1} parent=11 // pred_fallthru
          _
        // Predicated region
        $region29: #{tpu_custom_call.1} parent=11 // pred_check
          %p343 = pneg %p157
        $region30: #{tpu_custom_call.1} parent=11 // pred_check_branch
          %345 = sbr.rel (%p343) target = $region32
        $region31: #{tpu_custom_call.1} parent=11 // pred_region
          %s347 = ssub.s32 2048, 2048
          %348 = vsyncadd [#allocation9], %s347
          %s349 = sshll.u32 [#allocation10], 4
          %s350 = int_to_ptr.vmem [resolvable:$true] %s349
          %355 = dma.hbm_to_vmem [thread:$0]  %s5, 2048, %s350, [#allocation9], 64, 64, 4
        $region32: #{tpu_custom_call.1} parent=11 // pred_fallthru
          _
        // Predicated region
        $region33: #{tpu_custom_call.1} parent=11 // pred_check
          %p356 = pneg %p178
        $region34: #{tpu_custom_call.1} parent=11 // pred_check_branch
          %358 = sbr.rel (%p356) target = $region36
        $region35: #{tpu_custom_call.1} parent=11 // pred_region
          _
        $region36: #{tpu_custom_call.1} parent=11 // pred_fallthru
          _
        // Predicated region
        $region37: #{tpu_custom_call.1} parent=11 // pred_check
          %p359 = pneg %p199
        $region38: #{tpu_custom_call.1} parent=11 // pred_check_branch
          %361 = sbr.rel (%p359) target = $region40
        $region39: #{tpu_custom_call.1} parent=11 // pred_region
          %s363 = ssub.s32 1024, 1024
          %364 = vsyncadd [#allocation12], %s363
          %s365 = sshll.u32 [#allocation11], 4
          %s366 = int_to_ptr.vmem [resolvable:$true] %s365
          %371 = dma.hbm_to_vmem [thread:$0]  %s7, 1024, %s366, [#allocation12], 64, 64, 4
        $region40: #{tpu_custom_call.1} parent=11 // pred_fallthru
          _
        // Predicated region
        $region41: #{tpu_custom_call.1} parent=11 // pred_check
          %p372 = pneg %p220
        $region42: #{tpu_custom_call.1} parent=11 // pred_check_branch
          %374 = sbr.rel (%p372) target = $region44
        $region43: #{tpu_custom_call.1} parent=11 // pred_region
          _
        $region44: #{tpu_custom_call.1} parent=11 // pred_fallthru
          _
        // Predicated region
        $region45: #{tpu_custom_call.1} parent=11 // pred_check
          %p375 = pneg %p241
        $region46: #{tpu_custom_call.1} parent=11 // pred_check_branch
          %377 = sbr.rel (%p375) target = $region48
        $region47: #{tpu_custom_call.1} parent=11 // pred_region
          %s379 = ssub.s32 1024, 1024
          %380 = vsyncadd [#allocation12], %s379
          %s381 = sshll.u32 [#allocation13], 4
          %s382 = int_to_ptr.vmem [resolvable:$true] %s381
          %387 = dma.hbm_to_vmem [thread:$0]  %s9, 1024, %s382, [#allocation12], 64, 64, 4
        $region48: #{tpu_custom_call.1} parent=11 // pred_fallthru
          _
        // Predicated region
        $region49: #{tpu_custom_call.1} parent=11 // pred_check
          %p388 = pneg %p262
        $region50: #{tpu_custom_call.1} parent=11 // pred_check_branch
          %390 = sbr.rel (%p388) target = $region52
        $region51: #{tpu_custom_call.1} parent=11 // pred_region
          _
        $region52: #{tpu_custom_call.1} parent=11 // pred_fallthru
          _
      $region12: #{tpu_custom_call.1} parent=5 // pred_fallthru
        _
      %p391 = scmp.lt.s32.totalorder %s26, 2
      // Predicated region
      $region53: #{tpu_custom_call.1} parent=5 // pred_check
        %p392 = pneg %p391
      $region54: #{tpu_custom_call.1} parent=5 // pred_check_branch
        %394 = sbr.rel (%p392) target = $region56
      $region55: #{tpu_custom_call.1} parent=5 // pred_region
        // Predicated region
        $region57: #{tpu_custom_call.1} parent=55 // pred_check
          %p395 = pneg %p46
        $region58: #{tpu_custom_call.1} parent=55 // pred_check_branch
          %397 = sbr.rel (%p395) target = $region60
        $region59: #{tpu_custom_call.1} parent=55 // pred_region
          %s398 = sand.u32 %s36, 1
          %s399 = scalar_lea.sflag [#allocation3], %s398
          %s400 = sand.u32 %s36, 1
          %s401 = smul.addr %s400, 56
          %s402 = scalar_lea.vmem [#allocation2], %s401
          %s403 = smul.u32 2, %s26
          %s405 = ssub.s32 896, 896
          %406 = vsyncadd %s399, %s405
          %s407 = smul.addr %s403, 7
          %s408 = smul.addr %s407, 64
          %s409 = scalar_lea.hbm %s0, %s408
          %s410 = sshll.u32 %s402, 4
          %s411 = int_to_ptr.vmem [resolvable:$true] %s410
          %416 = dma.hbm_to_vmem [thread:$0]  %s409, 896, %s411, %s399, 448, 448, 28
        $region60: #{tpu_custom_call.1} parent=55 // pred_fallthru
          _
      $region56: #{tpu_custom_call.1} parent=5 // pred_fallthru
        _
      %p417 = scmp.le.s32.totalorder 1, %s26
      %p418 = scmp.lt.s32.totalorder %s26, 3
      %p419 = pnand %p417, %p418
      %p420 = pneg %p419
      // Predicated region
      $region61: #{tpu_custom_call.1} parent=5 // pred_check
        _
      $region62: #{tpu_custom_call.1} parent=5 // pred_check_branch
        %422 = sbr.rel (%p419) target = $region64
      $region63: #{tpu_custom_call.1} parent=5 // pred_region
        %s423 = ssub.s32 %s26, 1
        %s424 = sand.u32 %s39, 1
        %s425 = scalar_lea.sflag [#allocation3], %s424
        %s426 = sand.u32 %s39, 1
        %s427 = smul.addr %s426, 56
        %s428 = scalar_lea.vmem [#allocation2], %s427
        // Predicated region
        $region65: #{tpu_custom_call.1} parent=63 // pred_check
          %p429 = pneg %p52
        $region66: #{tpu_custom_call.1} parent=63 // pred_check_branch
          %431 = sbr.rel (%p429) target = $region68
        $region67: #{tpu_custom_call.1} parent=63 // pred_region
          %432 = dma.done %s425, 896
        $region68: #{tpu_custom_call.1} parent=63 // pred_fallthru
          _
        // Predicated region
        $region69: #{tpu_custom_call.1} parent=63 // pred_check
          %p433 = pneg %p73
        $region70: #{tpu_custom_call.1} parent=63 // pred_check_branch
          %435 = sbr.rel (%p433) target = $region72
        $region71: #{tpu_custom_call.1} parent=63 // pred_region
          %436 = dma.done [#allocation6], 25088
        $region72: #{tpu_custom_call.1} parent=63 // pred_fallthru
          _
        // Predicated region
        $region73: #{tpu_custom_call.1} parent=63 // pred_check
          %p437 = pneg %p94
        $region74: #{tpu_custom_call.1} parent=63 // pred_check_branch
          %439 = sbr.rel (%p437) target = $region76
        $region75: #{tpu_custom_call.1} parent=63 // pred_region
          %440 = dma.done [#allocation6], 64
        $region76: #{tpu_custom_call.1} parent=63 // pred_fallthru
          _
        // Predicated region
        $region77: #{tpu_custom_call.1} parent=63 // pred_check
          %p441 = pneg %p115
        $region78: #{tpu_custom_call.1} parent=63 // pred_check_branch
          %443 = sbr.rel (%p441) target = $region80
        $region79: #{tpu_custom_call.1} parent=63 // pred_region
          %444 = dma.done [#allocation9], 8192
        $region80: #{tpu_custom_call.1} parent=63 // pred_fallthru
          _
        // Predicated region
        $region81: #{tpu_custom_call.1} parent=63 // pred_check
          %p445 = pneg %p157
        $region82: #{tpu_custom_call.1} parent=63 // pred_check_branch
          %447 = sbr.rel (%p445) target = $region84
        $region83: #{tpu_custom_call.1} parent=63 // pred_region
          %448 = dma.done [#allocation9], 2048
        $region84: #{tpu_custom_call.1} parent=63 // pred_fallthru
          _
        // Predicated region
        $region85: #{tpu_custom_call.1} parent=63 // pred_check
          %p449 = pneg %p199
        $region86: #{tpu_custom_call.1} parent=63 // pred_check_branch
          %451 = sbr.rel (%p449) target = $region88
        $region87: #{tpu_custom_call.1} parent=63 // pred_region
          %452 = dma.done [#allocation12], 1024
        $region88: #{tpu_custom_call.1} parent=63 // pred_fallthru
          _
        // Predicated region
        $region89: #{tpu_custom_call.1} parent=63 // pred_check
          %p453 = pneg %p241
        $region90: #{tpu_custom_call.1} parent=63 // pred_check_branch
          %455 = sbr.rel (%p453) target = $region92
        $region91: #{tpu_custom_call.1} parent=63 // pred_region
          %456 = dma.done [#allocation12], 1024
        $region92: #{tpu_custom_call.1} parent=63 // pred_fallthru
          _
        %s457 = sand.u32 %s39, 1
        %s458 = scalar_lea.sflag [#allocation3], %s457
        %s459 = sand.u32 %s39, 1
        %s460 = smul.addr %s459, 56
        %s461 = scalar_lea.vmem [#allocation2], %s460
        %p462 = pneg %p52
        %p463 = pneg %p49
        %p464 = pneg %p73
        %p465 = pneg %p70
        %p466 = pneg %p94
        %p467 = pneg %p91
        %p468 = pneg %p115
        %p469 = pneg %p112
        %p470 = pneg %p136
        %p471 = pneg %p133
        %p472 = pneg %p157
        %p473 = pneg %p154
        %p474 = pneg %p178
        %p475 = pneg %p175
        %p476 = pneg %p199
        %p477 = pneg %p196
        %p478 = pneg %p220
        %p479 = pneg %p217
        %p480 = pneg %p241
        %p481 = pneg %p238
        %p482 = pneg %p262
        %p483 = pneg %p259
        %p484 = pneg %p288
        %p485 = pneg %p285
        %s486 = sand.u32 %s275, 1
        %s487 = scalar_lea.sflag [#allocation4], %s486
        %s488 = sand.u32 %s275, 1
        %s489 = smul.addr %s488, 8
        %s490 = scalar_lea.vmem [#allocation14], %s489
        %s491 = smul.u32 2, %s31
        %s492 = smul.u32 2, %s31
        %v494 = vld [vmem:[%s428] sm:$0xff]
        %v495 = vld [vmem:[%s428 + $0x8] sm:$0xff]
        %v496 = vld [vmem:[%s428 + $0x10] sm:$0xff]
        %v497 = vld [vmem:[%s428 + $0x18] sm:$0xf]
        %v498 = vld [vmem:[%s428 + $0x1c] sm:$0xff]
        %v499 = vld [vmem:[%s428 + $0x24] sm:$0xff]
        %v500 = vld [vmem:[%s428 + $0x2c] sm:$0xff]
        %v501 = vld [vmem:[%s428 + $0x34] sm:$0xf]
        %v502 = vld [vmem:[#allocation5] sm:$0xff]
        %v503 = vld [vmem:[#allocation5 + $0x8] sm:$0xff]
        %v504 = vld [vmem:[#allocation5 + $0x10] sm:$0xff]
        %v505 = vld [vmem:[#allocation5 + $0x18] sm:$0xff]
        %v506 = vld [vmem:[#allocation5 + $0x20] sm:$0xff]
        %v507 = vld [vmem:[#allocation5 + $0x28] sm:$0xff]
        %v508 = vld [vmem:[#allocation5 + $0x30] sm:$0xff]
        %v509 = vld [vmem:[#allocation5 + $0x38] sm:$0xff]
        %v510 = vld [vmem:[#allocation5 + $0x40] sm:$0xff]
        %v511 = vld [vmem:[#allocation5 + $0x48] sm:$0xff]
        %v512 = vld [vmem:[#allocation5 + $0x50] sm:$0xff]
        %v513 = vld [vmem:[#allocation5 + $0x58] sm:$0xff]
        %v514 = vld [vmem:[#allocation5 + $0x60] sm:$0xff]
        %v515 = vld [vmem:[#allocation5 + $0x68] sm:$0xff]
        %v516 = vld [vmem:[#allocation5 + $0x70] sm:$0xff]
        %v517 = vld [vmem:[#allocation5 + $0x78] sm:$0xff]
        %v518 = vld [vmem:[#allocation5 + $0x80] sm:$0xff]
        %v519 = vld [vmem:[#allocation5 + $0x88] sm:$0xff]
        %v520 = vld [vmem:[#allocation5 + $0x90] sm:$0xff]
        %v521 = vld [vmem:[#allocation5 + $0x98] sm:$0xff]
        %v522 = vld [vmem:[#allocation5 + $0xa0] sm:$0xff]
        %v523 = vld [vmem:[#allocation5 + $0xa8] sm:$0xff]
        %v524 = vld [vmem:[#allocation5 + $0xb0] sm:$0xff]
        %v525 = vld [vmem:[#allocation5 + $0xb8] sm:$0xff]
        %v526 = vld [vmem:[#allocation5 + $0xc0] sm:$0xff]
        %v527 = vld [vmem:[#allocation5 + $0xc8] sm:$0xff]
        %v528 = vld [vmem:[#allocation5 + $0xd0] sm:$0xff]
        %v529 = vld [vmem:[#allocation5 + $0xd8] sm:$0xff]
        %v530 = vld [vmem:[#allocation5 + $0xe0] sm:$0xff]
        %v531 = vld [vmem:[#allocation5 + $0xe8] sm:$0xff]
        %v532 = vld [vmem:[#allocation5 + $0xf0] sm:$0xff]
        %v533 = vld [vmem:[#allocation5 + $0xf8] sm:$0xff]
        %v534 = vld [vmem:[#allocation5 + $0x100] sm:$0xff]
        %v535 = vld [vmem:[#allocation5 + $0x108] sm:$0xff]
        %v536 = vld [vmem:[#allocation5 + $0x110] sm:$0xff]
        %v537 = vld [vmem:[#allocation5 + $0x118] sm:$0xff]
        %v538 = vld [vmem:[#allocation5 + $0x120] sm:$0xff]
        %v539 = vld [vmem:[#allocation5 + $0x128] sm:$0xff]
        %v540 = vld [vmem:[#allocation5 + $0x130] sm:$0xff]
        %v541 = vld [vmem:[#allocation5 + $0x138] sm:$0xff]
        %v542 = vld [vmem:[#allocation5 + $0x140] sm:$0xff]
        %v543 = vld [vmem:[#allocation5 + $0x148] sm:$0xff]
        %v544 = vld [vmem:[#allocation5 + $0x150] sm:$0xff]
        %v545 = vld [vmem:[#allocation5 + $0x158] sm:$0xff]
        %v546 = vld [vmem:[#allocation5 + $0x160] sm:$0xff]
        %v547 = vld [vmem:[#allocation5 + $0x168] sm:$0xff]
        %v548 = vld [vmem:[#allocation5 + $0x170] sm:$0xff]
        %v549 = vld [vmem:[#allocation5 + $0x178] sm:$0xff]
        %v550 = vld [vmem:[#allocation5 + $0x180] sm:$0xff]
        %v551 = vld [vmem:[#allocation5 + $0x188] sm:$0xff]
        %v552 = vld [vmem:[#allocation5 + $0x190] sm:$0xff]
        %v553 = vld [vmem:[#allocation5 + $0x198] sm:$0xff]
        %v554 = vld [vmem:[#allocation5 + $0x1a0] sm:$0xff]
        %v555 = vld [vmem:[#allocation5 + $0x1a8] sm:$0xff]
        %v556 = vld [vmem:[#allocation5 + $0x1b0] sm:$0xff]
        %v557 = vld [vmem:[#allocation5 + $0x1b8] sm:$0xff]
        %v558 = vld [vmem:[#allocation5 + $0x1c0] sm:$0xff]
        %v559 = vld [vmem:[#allocation5 + $0x1c8] sm:$0xff]
        %v560 = vld [vmem:[#allocation5 + $0x1d0] sm:$0xff]
        %v561 = vld [vmem:[#allocation5 + $0x1d8] sm:$0xff]
        %v562 = vld [vmem:[#allocation5 + $0x1e0] sm:$0xff]
        %v563 = vld [vmem:[#allocation5 + $0x1e8] sm:$0xff]
        %v564 = vld [vmem:[#allocation5 + $0x1f0] sm:$0xff]
        %v565 = vld [vmem:[#allocation5 + $0x1f8] sm:$0xff]
        %v566 = vld [vmem:[#allocation5 + $0x200] sm:$0xff]
        %v567 = vld [vmem:[#allocation5 + $0x208] sm:$0xff]
        %v568 = vld [vmem:[#allocation5 + $0x210] sm:$0xff]
        %v569 = vld [vmem:[#allocation5 + $0x218] sm:$0xff]
        %v570 = vld [vmem:[#allocation5 + $0x220] sm:$0xff]
        %v571 = vld [vmem:[#allocation5 + $0x228] sm:$0xff]
        %v572 = vld [vmem:[#allocation5 + $0x230] sm:$0xff]
        %v573 = vld [vmem:[#allocation5 + $0x238] sm:$0xff]
        %v574 = vld [vmem:[#allocation5 + $0x240] sm:$0xff]
        %v575 = vld [vmem:[#allocation5 + $0x248] sm:$0xff]
        %v576 = vld [vmem:[#allocation5 + $0x250] sm:$0xff]
        %v577 = vld [vmem:[#allocation5 + $0x258] sm:$0xff]
        %v578 = vld [vmem:[#allocation5 + $0x260] sm:$0xff]
        %v579 = vld [vmem:[#allocation5 + $0x268] sm:$0xff]
        %v580 = vld [vmem:[#allocation5 + $0x270] sm:$0xff]
        %v581 = vld [vmem:[#allocation5 + $0x278] sm:$0xff]
        %v582 = vld [vmem:[#allocation5 + $0x280] sm:$0xff]
        %v583 = vld [vmem:[#allocation5 + $0x288] sm:$0xff]
        %v584 = vld [vmem:[#allocation5 + $0x290] sm:$0xff]
        %v585 = vld [vmem:[#allocation5 + $0x298] sm:$0xff]
        %v586 = vld [vmem:[#allocation5 + $0x2a0] sm:$0xff]
        %v587 = vld [vmem:[#allocation5 + $0x2a8] sm:$0xff]
        %v588 = vld [vmem:[#allocation5 + $0x2b0] sm:$0xff]
        %v589 = vld [vmem:[#allocation5 + $0x2b8] sm:$0xff]
        %v590 = vld [vmem:[#allocation5 + $0x2c0] sm:$0xff]
        %v591 = vld [vmem:[#allocation5 + $0x2c8] sm:$0xff]
        %v592 = vld [vmem:[#allocation5 + $0x2d0] sm:$0xff]
        %v593 = vld [vmem:[#allocation5 + $0x2d8] sm:$0xff]
        %v594 = vld [vmem:[#allocation5 + $0x2e0] sm:$0xff]
        %v595 = vld [vmem:[#allocation5 + $0x2e8] sm:$0xff]
        %v596 = vld [vmem:[#allocation5 + $0x2f0] sm:$0xff]
        %v597 = vld [vmem:[#allocation5 + $0x2f8] sm:$0xff]
        %v598 = vld [vmem:[#allocation5 + $0x300] sm:$0xff]
        %v599 = vld [vmem:[#allocation5 + $0x308] sm:$0xff]
        %v600 = vld [vmem:[#allocation5 + $0x310] sm:$0xff]
        %v601 = vld [vmem:[#allocation5 + $0x318] sm:$0xff]
        %v602 = vld [vmem:[#allocation5 + $0x320] sm:$0xff]
        %v603 = vld [vmem:[#allocation5 + $0x328] sm:$0xff]
        %v604 = vld [vmem:[#allocation5 + $0x330] sm:$0xff]
        %v605 = vld [vmem:[#allocation5 + $0x338] sm:$0xff]
        %v606 = vld [vmem:[#allocation5 + $0x340] sm:$0xff]
        %v607 = vld [vmem:[#allocation5 + $0x348] sm:$0xff]
        %v608 = vld [vmem:[#allocation5 + $0x350] sm:$0xff]
        %v609 = vld [vmem:[#allocation5 + $0x358] sm:$0xff]
        %v610 = vld [vmem:[#allocation5 + $0x360] sm:$0xff]
        %v611 = vld [vmem:[#allocation5 + $0x368] sm:$0xff]
        %v612 = vld [vmem:[#allocation5 + $0x370] sm:$0xff]
        %v613 = vld [vmem:[#allocation5 + $0x378] sm:$0xff]
        %v614 = vld [vmem:[#allocation5 + $0x380] sm:$0xff]
        %v615 = vld [vmem:[#allocation5 + $0x388] sm:$0xff]
        %v616 = vld [vmem:[#allocation5 + $0x390] sm:$0xff]
        %v617 = vld [vmem:[#allocation5 + $0x398] sm:$0xff]
        %v618 = vld [vmem:[#allocation5 + $0x3a0] sm:$0xff]
        %v619 = vld [vmem:[#allocation5 + $0x3a8] sm:$0xff]
        %v620 = vld [vmem:[#allocation5 + $0x3b0] sm:$0xff]
        %v621 = vld [vmem:[#allocation5 + $0x3b8] sm:$0xff]
        %v622 = vld [vmem:[#allocation5 + $0x3c0] sm:$0xff]
        %v623 = vld [vmem:[#allocation5 + $0x3c8] sm:$0xff]
        %v624 = vld [vmem:[#allocation5 + $0x3d0] sm:$0xff]
        %v625 = vld [vmem:[#allocation5 + $0x3d8] sm:$0xff]
        %v626 = vld [vmem:[#allocation5 + $0x3e0] sm:$0xff]
        %v627 = vld [vmem:[#allocation5 + $0x3e8] sm:$0xff]
        %v628 = vld [vmem:[#allocation5 + $0x3f0] sm:$0xff]
        %v629 = vld [vmem:[#allocation5 + $0x3f8] sm:$0xff]
        %v630 = vld [vmem:[#allocation5 + $0x400] sm:$0xff]
        %v631 = vld [vmem:[#allocation5 + $0x408] sm:$0xff]
        %v632 = vld [vmem:[#allocation5 + $0x410] sm:$0xff]
        %v633 = vld [vmem:[#allocation5 + $0x418] sm:$0xff]
        %v634 = vld [vmem:[#allocation5 + $0x420] sm:$0xff]
        %v635 = vld [vmem:[#allocation5 + $0x428] sm:$0xff]
        %v636 = vld [vmem:[#allocation5 + $0x430] sm:$0xff]
        %v637 = vld [vmem:[#allocation5 + $0x438] sm:$0xff]
        %v638 = vld [vmem:[#allocation5 + $0x440] sm:$0xff]
        %v639 = vld [vmem:[#allocation5 + $0x448] sm:$0xff]
        %v640 = vld [vmem:[#allocation5 + $0x450] sm:$0xff]
        %v641 = vld [vmem:[#allocation5 + $0x458] sm:$0xff]
        %v642 = vld [vmem:[#allocation5 + $0x460] sm:$0xff]
        %v643 = vld [vmem:[#allocation5 + $0x468] sm:$0xff]
        %v644 = vld [vmem:[#allocation5 + $0x470] sm:$0xff]
        %v645 = vld [vmem:[#allocation5 + $0x478] sm:$0xff]
        %v646 = vld [vmem:[#allocation5 + $0x480] sm:$0xff]
        %v647 = vld [vmem:[#allocation5 + $0x488] sm:$0xff]
        %v648 = vld [vmem:[#allocation5 + $0x490] sm:$0xff]
        %v649 = vld [vmem:[#allocation5 + $0x498] sm:$0xff]
        %v650 = vld [vmem:[#allocation5 + $0x4a0] sm:$0xff]
        %v651 = vld [vmem:[#allocation5 + $0x4a8] sm:$0xff]
        %v652 = vld [vmem:[#allocation5 + $0x4b0] sm:$0xff]
        %v653 = vld [vmem:[#allocation5 + $0x4b8] sm:$0xff]
        %v654 = vld [vmem:[#allocation5 + $0x4c0] sm:$0xff]
        %v655 = vld [vmem:[#allocation5 + $0x4c8] sm:$0xff]
        %v656 = vld [vmem:[#allocation5 + $0x4d0] sm:$0xff]
        %v657 = vld [vmem:[#allocation5 + $0x4d8] sm:$0xff]
        %v658 = vld [vmem:[#allocation5 + $0x4e0] sm:$0xff]
        %v659 = vld [vmem:[#allocation5 + $0x4e8] sm:$0xff]
        %v660 = vld [vmem:[#allocation5 + $0x4f0] sm:$0xff]
        %v661 = vld [vmem:[#allocation5 + $0x4f8] sm:$0xff]
        %v662 = vld [vmem:[#allocation5 + $0x500] sm:$0xff]
        %v663 = vld [vmem:[#allocation5 + $0x508] sm:$0xff]
        %v664 = vld [vmem:[#allocation5 + $0x510] sm:$0xff]
        %v665 = vld [vmem:[#allocation5 + $0x518] sm:$0xff]
        %v666 = vld [vmem:[#allocation5 + $0x520] sm:$0xff]
        %v667 = vld [vmem:[#allocation5 + $0x528] sm:$0xff]
        %v668 = vld [vmem:[#allocation5 + $0x530] sm:$0xff]
        %v669 = vld [vmem:[#allocation5 + $0x538] sm:$0xff]
        %v670 = vld [vmem:[#allocation5 + $0x540] sm:$0xff]
        %v671 = vld [vmem:[#allocation5 + $0x548] sm:$0xff]
        %v672 = vld [vmem:[#allocation5 + $0x550] sm:$0xff]
        %v673 = vld [vmem:[#allocation5 + $0x558] sm:$0xff]
        %v674 = vld [vmem:[#allocation5 + $0x560] sm:$0xff]
        %v675 = vld [vmem:[#allocation5 + $0x568] sm:$0xff]
        %v676 = vld [vmem:[#allocation5 + $0x570] sm:$0xff]
        %v677 = vld [vmem:[#allocation5 + $0x578] sm:$0xff]
        %v678 = vld [vmem:[#allocation5 + $0x580] sm:$0xff]
        %v679 = vld [vmem:[#allocation5 + $0x588] sm:$0xff]
        %v680 = vld [vmem:[#allocation5 + $0x590] sm:$0xff]
        %v681 = vld [vmem:[#allocation5 + $0x598] sm:$0xff]
        %v682 = vld [vmem:[#allocation5 + $0x5a0] sm:$0xff]
        %v683 = vld [vmem:[#allocation5 + $0x5a8] sm:$0xff]
        %v684 = vld [vmem:[#allocation5 + $0x5b0] sm:$0xff]
        %v685 = vld [vmem:[#allocation5 + $0x5b8] sm:$0xff]
        %v686 = vld [vmem:[#allocation5 + $0x5c0] sm:$0xff]
        %v687 = vld [vmem:[#allocation5 + $0x5c8] sm:$0xff]
        %v688 = vld [vmem:[#allocation5 + $0x5d0] sm:$0xff]
        %v689 = vld [vmem:[#allocation5 + $0x5d8] sm:$0xff]
        %v690 = vld [vmem:[#allocation5 + $0x5e0] sm:$0xff]
        %v691 = vld [vmem:[#allocation5 + $0x5e8] sm:$0xff]
        %v692 = vld [vmem:[#allocation5 + $0x5f0] sm:$0xff]
        %v693 = vld [vmem:[#allocation5 + $0x5f8] sm:$0xff]
        %v694 = vld [vmem:[#allocation5 + $0x600] sm:$0xff]
        %v695 = vld [vmem:[#allocation5 + $0x608] sm:$0xff]
        %v696 = vld [vmem:[#allocation5 + $0x610] sm:$0xff]
        %v697 = vld [vmem:[#allocation5 + $0x618] sm:$0xff]
        %v698 = vld [vmem:[#allocation7] sm:$0xf]
        %v700 = vlaneseq
        %v701 = vshrl.u32 %v700, 7
        %v702 = vsub.s32 0, %v701
        %v703 = vrot.slane %v698, %v702
        %v704 = vlaneseq
        %v705 = vshrl.u32 %v704, 7
        %v706 = vsub.s32 1, %v705
        %v707 = vrot.slane %v698, %v706
        %v708 = vlaneseq
        %v709 = vshrl.u32 %v708, 7
        %v710 = vsub.s32 2, %v709
        %v711 = vrot.slane %v698, %v710
        %v712 = vlaneseq
        %v713 = vshrl.u32 %v712, 7
        %v714 = vsub.s32 3, %v713
        %v715 = vrot.slane %v698, %v714
        %v728 = vunpack.c.l.b16 %v494
        %v729 = vunpack.c.h.b16 %v494
        %v730 = vunpack.c.l.b16 %v495
        %v731 = vunpack.c.h.b16 %v495
        %v732 = vunpack.c.l.b16 %v496
        %v733 = vunpack.c.h.b16 %v496
        %v734 = vunpack.c.l.b16 %v497
        %v735 = vunpack.c.l.b16 %v498
        %v736 = vunpack.c.h.b16 %v498
        %v737 = vunpack.c.l.b16 %v499
        %v738 = vunpack.c.h.b16 %v499
        %v739 = vunpack.c.l.b16 %v500
        %v740 = vunpack.c.h.b16 %v500
        %v741 = vunpack.c.l.b16 %v501
        %v742 = vpack.c.b16 %v735, %v728
        %v743 = vpack.c.b16 %v736, %v729
        %v744 = vpack.c.b16 %v737, %v730
        %v745 = vpack.c.b16 %v738, %v731
        %v746 = vpack.c.b16 %v739, %v732
        %v747 = vpack.c.b16 %v740, %v733
        %v748 = vpack.c.b16 %v741, %v734
        %v951 = vunpack.c.l.b16 %v502
        %v952 = vunpack.c.h.b16 %v502
        %v953 = vunpack.c.l.b16 %v503
        %v954 = vunpack.c.h.b16 %v503
        %v955 = vunpack.c.l.b16 %v504
        %v956 = vunpack.c.h.b16 %v504
        %v957 = vunpack.c.l.b16 %v505
        %v958 = vunpack.c.h.b16 %v505
        %v959 = vunpack.c.l.b16 %v506
        %v960 = vunpack.c.h.b16 %v506
        %v961 = vunpack.c.l.b16 %v507
        %v962 = vunpack.c.h.b16 %v507
        %v963 = vunpack.c.l.b16 %v508
        %v964 = vunpack.c.h.b16 %v508
        %v965 = vunpack.c.l.b16 %v509
        %v966 = vunpack.c.h.b16 %v509
        %v967 = vunpack.c.l.b16 %v510
        %v968 = vunpack.c.h.b16 %v510
        %v969 = vunpack.c.l.b16 %v511
        %v970 = vunpack.c.h.b16 %v511
        %v971 = vunpack.c.l.b16 %v512
        %v972 = vunpack.c.h.b16 %v512
        %v973 = vunpack.c.l.b16 %v513
        %v974 = vunpack.c.h.b16 %v513
        %v975 = vunpack.c.l.b16 %v514
        %v976 = vunpack.c.h.b16 %v514
        %v977 = vunpack.c.l.b16 %v515
        %v978 = vunpack.c.h.b16 %v515
        %v979 = vunpack.c.l.b16 %v516
        %v980 = vunpack.c.h.b16 %v516
        %v981 = vunpack.c.l.b16 %v517
        %v982 = vunpack.c.h.b16 %v517
        %v983 = vunpack.c.l.b16 %v518
        %v984 = vunpack.c.h.b16 %v518
        %v985 = vunpack.c.l.b16 %v519
        %v986 = vunpack.c.h.b16 %v519
        %v987 = vunpack.c.l.b16 %v520
        %v988 = vunpack.c.h.b16 %v520
        %v989 = vunpack.c.l.b16 %v521
        %v990 = vunpack.c.h.b16 %v521
        %v991 = vunpack.c.l.b16 %v522
        %v992 = vunpack.c.h.b16 %v522
        %v993 = vunpack.c.l.b16 %v523
        %v994 = vunpack.c.h.b16 %v523
        %v995 = vunpack.c.l.b16 %v524
        %v996 = vunpack.c.h.b16 %v524
        %v997 = vunpack.c.l.b16 %v525
        %v998 = vunpack.c.h.b16 %v525
        %v999 = vunpack.c.l.b16 %v526
        %v1000 = vunpack.c.h.b16 %v526
        %v1001 = vunpack.c.l.b16 %v527
        %v1002 = vunpack.c.h.b16 %v527
        %v1003 = vunpack.c.l.b16 %v528
        %v1004 = vunpack.c.h.b16 %v528
        %v1005 = vunpack.c.l.b16 %v529
        %v1006 = vunpack.c.h.b16 %v529
        %v1007 = vunpack.c.l.b16 %v530
        %v1008 = vunpack.c.h.b16 %v530
        %v1009 = vunpack.c.l.b16 %v531
        %v1010 = vunpack.c.h.b16 %v531
        %v1011 = vunpack.c.l.b16 %v532
        %v1012 = vunpack.c.h.b16 %v532
        %v1013 = vunpack.c.l.b16 %v533
        %v1014 = vunpack.c.h.b16 %v533
        %v1015 = vunpack.c.l.b16 %v534
        %v1016 = vunpack.c.h.b16 %v534
        %v1017 = vunpack.c.l.b16 %v535
        %v1018 = vunpack.c.h.b16 %v535
        %v1019 = vunpack.c.l.b16 %v536
        %v1020 = vunpack.c.h.b16 %v536
        %v1021 = vunpack.c.l.b16 %v537
        %v1022 = vunpack.c.h.b16 %v537
        %v1023 = vunpack.c.l.b16 %v538
        %v1024 = vunpack.c.h.b16 %v538
        %v1025 = vunpack.c.l.b16 %v539
        %v1026 = vunpack.c.h.b16 %v539
        %v1027 = vunpack.c.l.b16 %v540
        %v1028 = vunpack.c.h.b16 %v540
        %v1029 = vunpack.c.l.b16 %v541
        %v1030 = vunpack.c.h.b16 %v541
        %v1031 = vunpack.c.l.b16 %v542
        %v1032 = vunpack.c.h.b16 %v542
        %v1033 = vunpack.c.l.b16 %v543
        %v1034 = vunpack.c.h.b16 %v543
        %v1035 = vunpack.c.l.b16 %v544
        %v1036 = vunpack.c.h.b16 %v544
        %v1037 = vunpack.c.l.b16 %v545
        %v1038 = vunpack.c.h.b16 %v545
        %v1039 = vunpack.c.l.b16 %v546
        %v1040 = vunpack.c.h.b16 %v546
        %v1041 = vunpack.c.l.b16 %v547
        %v1042 = vunpack.c.h.b16 %v547
        %v1043 = vunpack.c.l.b16 %v548
        %v1044 = vunpack.c.h.b16 %v548
        %v1045 = vunpack.c.l.b16 %v549
        %v1046 = vunpack.c.h.b16 %v549
        %v1047 = vunpack.c.l.b16 %v550
        %v1048 = vunpack.c.h.b16 %v550
        %v1049 = vunpack.c.l.b16 %v551
        %v1050 = vunpack.c.h.b16 %v551
        %v1051 = vunpack.c.l.b16 %v552
        %v1052 = vunpack.c.h.b16 %v552
        %v1053 = vunpack.c.l.b16 %v553
        %v1054 = vunpack.c.h.b16 %v553
        %v1055 = vunpack.c.l.b16 %v554
        %v1056 = vunpack.c.h.b16 %v554
        %v1057 = vunpack.c.l.b16 %v555
        %v1058 = vunpack.c.h.b16 %v555
        %v1059 = vunpack.c.l.b16 %v556
        %v1060 = vunpack.c.h.b16 %v556
        %v1061 = vunpack.c.l.b16 %v557
        %v1062 = vunpack.c.h.b16 %v557
        %v1063 = vunpack.c.l.b16 %v558
        %v1064 = vunpack.c.h.b16 %v558
        %v1065 = vunpack.c.l.b16 %v559
        %v1066 = vunpack.c.h.b16 %v559
        %v1067 = vunpack.c.l.b16 %v560
        %v1068 = vunpack.c.h.b16 %v560
        %v1069 = vunpack.c.l.b16 %v561
        %v1070 = vunpack.c.h.b16 %v561
        %v1071 = vunpack.c.l.b16 %v562
        %v1072 = vunpack.c.h.b16 %v562
        %v1073 = vunpack.c.l.b16 %v563
        %v1074 = vunpack.c.h.b16 %v563
        %v1075 = vunpack.c.l.b16 %v564
        %v1076 = vunpack.c.h.b16 %v564
        %v1077 = vunpack.c.l.b16 %v565
        %v1078 = vunpack.c.h.b16 %v565
        %v1079 = vunpack.c.l.b16 %v566
        %v1080 = vunpack.c.h.b16 %v566
        %v1081 = vunpack.c.l.b16 %v567
        %v1082 = vunpack.c.h.b16 %v567
        %v1083 = vunpack.c.l.b16 %v568
        %v1084 = vunpack.c.h.b16 %v568
        %v1085 = vunpack.c.l.b16 %v569
        %v1086 = vunpack.c.h.b16 %v569
        %v1087 = vunpack.c.l.b16 %v570
        %v1088 = vunpack.c.h.b16 %v570
        %v1089 = vunpack.c.l.b16 %v571
        %v1090 = vunpack.c.h.b16 %v571
        %v1091 = vunpack.c.l.b16 %v572
        %v1092 = vunpack.c.h.b16 %v572
        %v1093 = vunpack.c.l.b16 %v573
        %v1094 = vunpack.c.h.b16 %v573
        %v1095 = vunpack.c.l.b16 %v574
        %v1096 = vunpack.c.h.b16 %v574
        %v1097 = vunpack.c.l.b16 %v575
        %v1098 = vunpack.c.h.b16 %v575
        %v1099 = vunpack.c.l.b16 %v576
        %v1100 = vunpack.c.h.b16 %v576
        %v1101 = vunpack.c.l.b16 %v577
        %v1102 = vunpack.c.h.b16 %v577
        %v1103 = vunpack.c.l.b16 %v578
        %v1104 = vunpack.c.h.b16 %v578
        %v1105 = vunpack.c.l.b16 %v579
        %v1106 = vunpack.c.h.b16 %v579
        %v1107 = vunpack.c.l.b16 %v580
        %v1108 = vunpack.c.h.b16 %v580
        %v1109 = vunpack.c.l.b16 %v581
        %v1110 = vunpack.c.h.b16 %v581
        %v1111 = vunpack.c.l.b16 %v582
        %v1112 = vunpack.c.h.b16 %v582
        %v1113 = vunpack.c.l.b16 %v583
        %v1114 = vunpack.c.h.b16 %v583
        %v1115 = vunpack.c.l.b16 %v584
        %v1116 = vunpack.c.h.b16 %v584
        %v1117 = vunpack.c.l.b16 %v585
        %v1118 = vunpack.c.h.b16 %v585
        %v1119 = vunpack.c.l.b16 %v586
        %v1120 = vunpack.c.h.b16 %v586
        %v1121 = vunpack.c.l.b16 %v587
        %v1122 = vunpack.c.h.b16 %v587
        %v1123 = vunpack.c.l.b16 %v588
        %v1124 = vunpack.c.h.b16 %v588
        %v1125 = vunpack.c.l.b16 %v589
        %v1126 = vunpack.c.h.b16 %v589
        %v1127 = vunpack.c.l.b16 %v590
        %v1128 = vunpack.c.h.b16 %v590
        %v1129 = vunpack.c.l.b16 %v591
        %v1130 = vunpack.c.h.b16 %v591
        %v1131 = vunpack.c.l.b16 %v592
        %v1132 = vunpack.c.h.b16 %v592
        %v1133 = vunpack.c.l.b16 %v593
        %v1134 = vunpack.c.h.b16 %v593
        %v1135 = vunpack.c.l.b16 %v594
        %v1136 = vunpack.c.h.b16 %v594
        %v1137 = vunpack.c.l.b16 %v595
        %v1138 = vunpack.c.h.b16 %v595
        %v1139 = vunpack.c.l.b16 %v596
        %v1140 = vunpack.c.h.b16 %v596
        %v1141 = vunpack.c.l.b16 %v597
        %v1142 = vunpack.c.h.b16 %v597
        %v1143 = vunpack.c.l.b16 %v598
        %v1144 = vunpack.c.h.b16 %v598
        %v1145 = vunpack.c.l.b16 %v599
        %v1146 = vunpack.c.h.b16 %v599
        %v1147 = vunpack.c.l.b16 %v600
        %v1148 = vunpack.c.h.b16 %v600
        %v1149 = vunpack.c.l.b16 %v601
        %v1150 = vunpack.c.h.b16 %v601
        %v1151 = vunpack.c.l.b16 %v602
        %v1152 = vunpack.c.h.b16 %v602
        %v1153 = vunpack.c.l.b16 %v603
        %v1154 = vunpack.c.h.b16 %v603
        %v1155 = vunpack.c.l.b16 %v604
        %v1156 = vunpack.c.h.b16 %v604
        %v1157 = vunpack.c.l.b16 %v605
        %v1158 = vunpack.c.h.b16 %v605
        %v1159 = vunpack.c.l.b16 %v606
        %v1160 = vunpack.c.h.b16 %v606
        %v1161 = vunpack.c.l.b16 %v607
        %v1162 = vunpack.c.h.b16 %v607
        %v1163 = vunpack.c.l.b16 %v608
        %v1164 = vunpack.c.h.b16 %v608
        %v1165 = vunpack.c.l.b16 %v609
        %v1166 = vunpack.c.h.b16 %v609
        %v1167 = vunpack.c.l.b16 %v610
        %v1168 = vunpack.c.h.b16 %v610
        %v1169 = vunpack.c.l.b16 %v611
        %v1170 = vunpack.c.h.b16 %v611
        %v1171 = vunpack.c.l.b16 %v612
        %v1172 = vunpack.c.h.b16 %v612
        %v1173 = vunpack.c.l.b16 %v613
        %v1174 = vunpack.c.h.b16 %v613
        %v1175 = vunpack.c.l.b16 %v614
        %v1176 = vunpack.c.h.b16 %v614
        %v1177 = vunpack.c.l.b16 %v615
        %v1178 = vunpack.c.h.b16 %v615
        %v1179 = vunpack.c.l.b16 %v616
        %v1180 = vunpack.c.h.b16 %v616
        %v1181 = vunpack.c.l.b16 %v617
        %v1182 = vunpack.c.h.b16 %v617
        %v1183 = vunpack.c.l.b16 %v618
        %v1184 = vunpack.c.h.b16 %v618
        %v1185 = vunpack.c.l.b16 %v619
        %v1186 = vunpack.c.h.b16 %v619
        %v1187 = vunpack.c.l.b16 %v620
        %v1188 = vunpack.c.h.b16 %v620
        %v1189 = vunpack.c.l.b16 %v621
        %v1190 = vunpack.c.h.b16 %v621
        %v1191 = vunpack.c.l.b16 %v622
        %v1192 = vunpack.c.h.b16 %v622
        %v1193 = vunpack.c.l.b16 %v623
        %v1194 = vunpack.c.h.b16 %v623
        %v1195 = vunpack.c.l.b16 %v624
        %v1196 = vunpack.c.h.b16 %v624
        %v1197 = vunpack.c.l.b16 %v625
        %v1198 = vunpack.c.h.b16 %v625
        %v1199 = vunpack.c.l.b16 %v626
        %v1200 = vunpack.c.h.b16 %v626
        %v1201 = vunpack.c.l.b16 %v627
        %v1202 = vunpack.c.h.b16 %v627
        %v1203 = vunpack.c.l.b16 %v628
        %v1204 = vunpack.c.h.b16 %v628
        %v1205 = vunpack.c.l.b16 %v629
        %v1206 = vunpack.c.h.b16 %v629
        %v1207 = vunpack.c.l.b16 %v630
        %v1208 = vunpack.c.h.b16 %v630
        %v1209 = vunpack.c.l.b16 %v631
        %v1210 = vunpack.c.h.b16 %v631
        %v1211 = vunpack.c.l.b16 %v632
        %v1212 = vunpack.c.h.b16 %v632
        %v1213 = vunpack.c.l.b16 %v633
        %v1214 = vunpack.c.h.b16 %v633
        %v1215 = vunpack.c.l.b16 %v634
        %v1216 = vunpack.c.h.b16 %v634
        %v1217 = vunpack.c.l.b16 %v635
        %v1218 = vunpack.c.h.b16 %v635
        %v1219 = vunpack.c.l.b16 %v636
        %v1220 = vunpack.c.h.b16 %v636
        %v1221 = vunpack.c.l.b16 %v637
        %v1222 = vunpack.c.h.b16 %v637
        %v1223 = vunpack.c.l.b16 %v638
        %v1224 = vunpack.c.h.b16 %v638
        %v1225 = vunpack.c.l.b16 %v639
        %v1226 = vunpack.c.h.b16 %v639
        %v1227 = vunpack.c.l.b16 %v640
        %v1228 = vunpack.c.h.b16 %v640
        %v1229 = vunpack.c.l.b16 %v641
        %v1230 = vunpack.c.h.b16 %v641
        %v1231 = vunpack.c.l.b16 %v642
        %v1232 = vunpack.c.h.b16 %v642
        %v1233 = vunpack.c.l.b16 %v643
        %v1234 = vunpack.c.h.b16 %v643
        %v1235 = vunpack.c.l.b16 %v644
        %v1236 = vunpack.c.h.b16 %v644
        %v1237 = vunpack.c.l.b16 %v645
        %v1238 = vunpack.c.h.b16 %v645
        %v1239 = vunpack.c.l.b16 %v646
        %v1240 = vunpack.c.h.b16 %v646
        %v1241 = vunpack.c.l.b16 %v647
        %v1242 = vunpack.c.h.b16 %v647
        %v1243 = vunpack.c.l.b16 %v648
        %v1244 = vunpack.c.h.b16 %v648
        %v1245 = vunpack.c.l.b16 %v649
        %v1246 = vunpack.c.h.b16 %v649
        %v1247 = vunpack.c.l.b16 %v650
        %v1248 = vunpack.c.h.b16 %v650
        %v1249 = vunpack.c.l.b16 %v651
        %v1250 = vunpack.c.h.b16 %v651
        %v1251 = vunpack.c.l.b16 %v652
        %v1252 = vunpack.c.h.b16 %v652
        %v1253 = vunpack.c.l.b16 %v653
        %v1254 = vunpack.c.h.b16 %v653
        %v1255 = vunpack.c.l.b16 %v654
        %v1256 = vunpack.c.h.b16 %v654
        %v1257 = vunpack.c.l.b16 %v655
        %v1258 = vunpack.c.h.b16 %v655
        %v1259 = vunpack.c.l.b16 %v656
        %v1260 = vunpack.c.h.b16 %v656
        %v1261 = vunpack.c.l.b16 %v657
        %v1262 = vunpack.c.h.b16 %v657
        %v1263 = vunpack.c.l.b16 %v658
        %v1264 = vunpack.c.h.b16 %v658
        %v1265 = vunpack.c.l.b16 %v659
        %v1266 = vunpack.c.h.b16 %v659
        %v1267 = vunpack.c.l.b16 %v660
        %v1268 = vunpack.c.h.b16 %v660
        %v1269 = vunpack.c.l.b16 %v661
        %v1270 = vunpack.c.h.b16 %v661
        %v1271 = vunpack.c.l.b16 %v662
        %v1272 = vunpack.c.h.b16 %v662
        %v1273 = vunpack.c.l.b16 %v663
        %v1274 = vunpack.c.h.b16 %v663
        %v1275 = vunpack.c.l.b16 %v664
        %v1276 = vunpack.c.h.b16 %v664
        %v1277 = vunpack.c.l.b16 %v665
        %v1278 = vunpack.c.h.b16 %v665
        %v1279 = vunpack.c.l.b16 %v666
        %v1280 = vunpack.c.h.b16 %v666
        %v1281 = vunpack.c.l.b16 %v667
        %v1282 = vunpack.c.h.b16 %v667
        %v1283 = vunpack.c.l.b16 %v668
        %v1284 = vunpack.c.h.b16 %v668
        %v1285 = vunpack.c.l.b16 %v669
        %v1286 = vunpack.c.h.b16 %v669
        %v1287 = vunpack.c.l.b16 %v670
        %v1288 = vunpack.c.h.b16 %v670
        %v1289 = vunpack.c.l.b16 %v671
        %v1290 = vunpack.c.h.b16 %v671
        %v1291 = vunpack.c.l.b16 %v672
        %v1292 = vunpack.c.h.b16 %v672
        %v1293 = vunpack.c.l.b16 %v673
        %v1294 = vunpack.c.h.b16 %v673
        %v1295 = vunpack.c.l.b16 %v674
        %v1296 = vunpack.c.h.b16 %v674
        %v1297 = vunpack.c.l.b16 %v675
        %v1298 = vunpack.c.h.b16 %v675
        %v1299 = vunpack.c.l.b16 %v676
        %v1300 = vunpack.c.h.b16 %v676
        %v1301 = vunpack.c.l.b16 %v677
        %v1302 = vunpack.c.h.b16 %v677
        %v1303 = vunpack.c.l.b16 %v678
        %v1304 = vunpack.c.h.b16 %v678
        %v1305 = vunpack.c.l.b16 %v679
        %v1306 = vunpack.c.h.b16 %v679
        %v1307 = vunpack.c.l.b16 %v680
        %v1308 = vunpack.c.h.b16 %v680
        %v1309 = vunpack.c.l.b16 %v681
        %v1310 = vunpack.c.h.b16 %v681
        %v1311 = vunpack.c.l.b16 %v682
        %v1312 = vunpack.c.h.b16 %v682
        %v1313 = vunpack.c.l.b16 %v683
        %v1314 = vunpack.c.h.b16 %v683
        %v1315 = vunpack.c.l.b16 %v684
        %v1316 = vunpack.c.h.b16 %v684
        %v1317 = vunpack.c.l.b16 %v685
        %v1318 = vunpack.c.h.b16 %v685
        %v1319 = vunpack.c.l.b16 %v686
        %v1320 = vunpack.c.h.b16 %v686
        %v1321 = vunpack.c.l.b16 %v687
        %v1322 = vunpack.c.h.b16 %v687
        %v1323 = vunpack.c.l.b16 %v688
        %v1324 = vunpack.c.h.b16 %v688
        %v1325 = vunpack.c.l.b16 %v689
        %v1326 = vunpack.c.h.b16 %v689
        %v1327 = vunpack.c.l.b16 %v690
        %v1328 = vunpack.c.h.b16 %v690
        %v1329 = vunpack.c.l.b16 %v691
        %v1330 = vunpack.c.h.b16 %v691
        %v1331 = vunpack.c.l.b16 %v692
        %v1332 = vunpack.c.h.b16 %v692
        %v1333 = vunpack.c.l.b16 %v693
        %v1334 = vunpack.c.h.b16 %v693
        %v1335 = vunpack.c.l.b16 %v694
        %v1336 = vunpack.c.h.b16 %v694
        %v1337 = vunpack.c.l.b16 %v695
        %v1338 = vunpack.c.h.b16 %v695
        %v1339 = vunpack.c.l.b16 %v696
        %v1340 = vunpack.c.h.b16 %v696
        %v1341 = vunpack.c.l.b16 %v697
        %v1342 = vunpack.c.h.b16 %v697
        %v1343 = vpack.c.b16 %v955, %v951
        %v1344 = vpack.c.b16 %v956, %v952
        %v1345 = vpack.c.b16 %v957, %v953
        %v1346 = vpack.c.b16 %v958, %v954
        %v1347 = vpack.c.b16 %v963, %v959
        %v1348 = vpack.c.b16 %v964, %v960
        %v1349 = vpack.c.b16 %v965, %v961
        %v1350 = vpack.c.b16 %v966, %v962
        %v1351 = vpack.c.b16 %v971, %v967
        %v1352 = vpack.c.b16 %v972, %v968
        %v1353 = vpack.c.b16 %v973, %v969
        %v1354 = vpack.c.b16 %v974, %v970
        %v1355 = vpack.c.b16 %v979, %v975
        %v1356 = vpack.c.b16 %v980, %v976
        %v1357 = vpack.c.b16 %v981, %v977
        %v1358 = vpack.c.b16 %v982, %v978
        %v1359 = vpack.c.b16 %v987, %v983
        %v1360 = vpack.c.b16 %v988, %v984
        %v1361 = vpack.c.b16 %v989, %v985
        %v1362 = vpack.c.b16 %v990, %v986
        %v1363 = vpack.c.b16 %v995, %v991
        %v1364 = vpack.c.b16 %v996, %v992
        %v1365 = vpack.c.b16 %v997, %v993
        %v1366 = vpack.c.b16 %v998, %v994
        %v1367 = vpack.c.b16 %v1003, %v999
        %v1368 = vpack.c.b16 %v1004, %v1000
        %v1369 = vpack.c.b16 %v1005, %v1001
        %v1370 = vpack.c.b16 %v1006, %v1002
        %v1371 = vpack.c.b16 %v1011, %v1007
        %v1372 = vpack.c.b16 %v1012, %v1008
        %v1373 = vpack.c.b16 %v1013, %v1009
        %v1374 = vpack.c.b16 %v1014, %v1010
        %v1375 = vpack.c.b16 %v1019, %v1015
        %v1376 = vpack.c.b16 %v1020, %v1016
        %v1377 = vpack.c.b16 %v1021, %v1017
        %v1378 = vpack.c.b16 %v1022, %v1018
        %v1379 = vpack.c.b16 %v1027, %v1023
        %v1380 = vpack.c.b16 %v1028, %v1024
        %v1381 = vpack.c.b16 %v1029, %v1025
        %v1382 = vpack.c.b16 %v1030, %v1026
        %v1383 = vpack.c.b16 %v1035, %v1031
        %v1384 = vpack.c.b16 %v1036, %v1032
        %v1385 = vpack.c.b16 %v1037, %v1033
        %v1386 = vpack.c.b16 %v1038, %v1034
        %v1387 = vpack.c.b16 %v1043, %v1039
        %v1388 = vpack.c.b16 %v1044, %v1040
        %v1389 = vpack.c.b16 %v1045, %v1041
        %v1390 = vpack.c.b16 %v1046, %v1042
        %v1391 = vpack.c.b16 %v1051, %v1047
        %v1392 = vpack.c.b16 %v1052, %v1048
        %v1393 = vpack.c.b16 %v1053, %v1049
        %v1394 = vpack.c.b16 %v1054, %v1050
        %v1395 = vpack.c.b16 %v1059, %v1055
        %v1396 = vpack.c.b16 %v1060, %v1056
        %v1397 = vpack.c.b16 %v1061, %v1057
        %v1398 = vpack.c.b16 %v1062, %v1058
        %v1399 = vpack.c.b16 %v1067, %v1063
        %v1400 = vpack.c.b16 %v1068, %v1064
        %v1401 = vpack.c.b16 %v1069, %v1065
        %v1402 = vpack.c.b16 %v1070, %v1066
        %v1403 = vpack.c.b16 %v1075, %v1071
        %v1404 = vpack.c.b16 %v1076, %v1072
        %v1405 = vpack.c.b16 %v1077, %v1073
        %v1406 = vpack.c.b16 %v1078, %v1074
        %v1407 = vpack.c.b16 %v1083, %v1079
        %v1408 = vpack.c.b16 %v1084, %v1080
        %v1409 = vpack.c.b16 %v1085, %v1081
        %v1410 = vpack.c.b16 %v1086, %v1082
        %v1411 = vpack.c.b16 %v1091, %v1087
        %v1412 = vpack.c.b16 %v1092, %v1088
        %v1413 = vpack.c.b16 %v1093, %v1089
        %v1414 = vpack.c.b16 %v1094, %v1090
        %v1415 = vpack.c.b16 %v1099, %v1095
        %v1416 = vpack.c.b16 %v1100, %v1096
        %v1417 = vpack.c.b16 %v1101, %v1097
        %v1418 = vpack.c.b16 %v1102, %v1098
        %v1419 = vpack.c.b16 %v1107, %v1103
        %v1420 = vpack.c.b16 %v1108, %v1104
        %v1421 = vpack.c.b16 %v1109, %v1105
        %v1422 = vpack.c.b16 %v1110, %v1106
        %v1423 = vpack.c.b16 %v1115, %v1111
        %v1424 = vpack.c.b16 %v1116, %v1112
        %v1425 = vpack.c.b16 %v1117, %v1113
        %v1426 = vpack.c.b16 %v1118, %v1114
        %v1427 = vpack.c.b16 %v1123, %v1119
        %v1428 = vpack.c.b16 %v1124, %v1120
        %v1429 = vpack.c.b16 %v1125, %v1121
        %v1430 = vpack.c.b16 %v1126, %v1122
        %v1431 = vpack.c.b16 %v1131, %v1127
        %v1432 = vpack.c.b16 %v1132, %v1128
        %v1433 = vpack.c.b16 %v1133, %v1129
        %v1434 = vpack.c.b16 %v1134, %v1130
        %v1435 = vpack.c.b16 %v1139, %v1135
        %v1436 = vpack.c.b16 %v1140, %v1136
        %v1437 = vpack.c.b16 %v1141, %v1137
        %v1438 = vpack.c.b16 %v1142, %v1138
        %v1439 = vpack.c.b16 %v1147, %v1143
        %v1440 = vpack.c.b16 %v1148, %v1144
        %v1441 = vpack.c.b16 %v1149, %v1145
        %v1442 = vpack.c.b16 %v1150, %v1146
        %v1443 = vpack.c.b16 %v1155, %v1151
        %v1444 = vpack.c.b16 %v1156, %v1152
        %v1445 = vpack.c.b16 %v1157, %v1153
        %v1446 = vpack.c.b16 %v1158, %v1154
        %v1447 = vpack.c.b16 %v1163, %v1159
        %v1448 = vpack.c.b16 %v1164, %v1160
        %v1449 = vpack.c.b16 %v1165, %v1161
        %v1450 = vpack.c.b16 %v1166, %v1162
        %v1451 = vpack.c.b16 %v1171, %v1167
        %v1452 = vpack.c.b16 %v1172, %v1168
        %v1453 = vpack.c.b16 %v1173, %v1169
        %v1454 = vpack.c.b16 %v1174, %v1170
        %v1455 = vpack.c.b16 %v1179, %v1175
        %v1456 = vpack.c.b16 %v1180, %v1176
        %v1457 = vpack.c.b16 %v1181, %v1177
        %v1458 = vpack.c.b16 %v1182, %v1178
        %v1459 = vpack.c.b16 %v1187, %v1183
        %v1460 = vpack.c.b16 %v1188, %v1184
        %v1461 = vpack.c.b16 %v1189, %v1185
        %v1462 = vpack.c.b16 %v1190, %v1186
        %v1463 = vpack.c.b16 %v1195, %v1191
        %v1464 = vpack.c.b16 %v1196, %v1192
        %v1465 = vpack.c.b16 %v1197, %v1193
        %v1466 = vpack.c.b16 %v1198, %v1194
        %v1467 = vpack.c.b16 %v1203, %v1199
        %v1468 = vpack.c.b16 %v1204, %v1200
        %v1469 = vpack.c.b16 %v1205, %v1201
        %v1470 = vpack.c.b16 %v1206, %v1202
        %v1471 = vpack.c.b16 %v1211, %v1207
        %v1472 = vpack.c.b16 %v1212, %v1208
        %v1473 = vpack.c.b16 %v1213, %v1209
        %v1474 = vpack.c.b16 %v1214, %v1210
        %v1475 = vpack.c.b16 %v1219, %v1215
        %v1476 = vpack.c.b16 %v1220, %v1216
        %v1477 = vpack.c.b16 %v1221, %v1217
        %v1478 = vpack.c.b16 %v1222, %v1218
        %v1479 = vpack.c.b16 %v1227, %v1223
        %v1480 = vpack.c.b16 %v1228, %v1224
        %v1481 = vpack.c.b16 %v1229, %v1225
        %v1482 = vpack.c.b16 %v1230, %v1226
        %v1483 = vpack.c.b16 %v1235, %v1231
        %v1484 = vpack.c.b16 %v1236, %v1232
        %v1485 = vpack.c.b16 %v1237, %v1233
        %v1486 = vpack.c.b16 %v1238, %v1234
        %v1487 = vpack.c.b16 %v1243, %v1239
        %v1488 = vpack.c.b16 %v1244, %v1240
        %v1489 = vpack.c.b16 %v1245, %v1241
        %v1490 = vpack.c.b16 %v1246, %v1242
        %v1491 = vpack.c.b16 %v1251, %v1247
        %v1492 = vpack.c.b16 %v1252, %v1248
        %v1493 = vpack.c.b16 %v1253, %v1249
        %v1494 = vpack.c.b16 %v1254, %v1250
        %v1495 = vpack.c.b16 %v1259, %v1255
        %v1496 = vpack.c.b16 %v1260, %v1256
        %v1497 = vpack.c.b16 %v1261, %v1257
        %v1498 = vpack.c.b16 %v1262, %v1258
        %v1499 = vpack.c.b16 %v1267, %v1263
        %v1500 = vpack.c.b16 %v1268, %v1264
        %v1501 = vpack.c.b16 %v1269, %v1265
        %v1502 = vpack.c.b16 %v1270, %v1266
        %v1503 = vpack.c.b16 %v1275, %v1271
        %v1504 = vpack.c.b16 %v1276, %v1272
        %v1505 = vpack.c.b16 %v1277, %v1273
        %v1506 = vpack.c.b16 %v1278, %v1274
        %v1507 = vpack.c.b16 %v1283, %v1279
        %v1508 = vpack.c.b16 %v1284, %v1280
        %v1509 = vpack.c.b16 %v1285, %v1281
        %v1510 = vpack.c.b16 %v1286, %v1282
        %v1511 = vpack.c.b16 %v1291, %v1287
        %v1512 = vpack.c.b16 %v1292, %v1288
        %v1513 = vpack.c.b16 %v1293, %v1289
        %v1514 = vpack.c.b16 %v1294, %v1290
        %v1515 = vpack.c.b16 %v1299, %v1295
        %v1516 = vpack.c.b16 %v1300, %v1296
        %v1517 = vpack.c.b16 %v1301, %v1297
        %v1518 = vpack.c.b16 %v1302, %v1298
        %v1519 = vpack.c.b16 %v1307, %v1303
        %v1520 = vpack.c.b16 %v1308, %v1304
        %v1521 = vpack.c.b16 %v1309, %v1305
        %v1522 = vpack.c.b16 %v1310, %v1306
        %v1523 = vpack.c.b16 %v1315, %v1311
        %v1524 = vpack.c.b16 %v1316, %v1312
        %v1525 = vpack.c.b16 %v1317, %v1313
        %v1526 = vpack.c.b16 %v1318, %v1314
        %v1527 = vpack.c.b16 %v1323, %v1319
        %v1528 = vpack.c.b16 %v1324, %v1320
        %v1529 = vpack.c.b16 %v1325, %v1321
        %v1530 = vpack.c.b16 %v1326, %v1322
        %v1531 = vpack.c.b16 %v1331, %v1327
        %v1532 = vpack.c.b16 %v1332, %v1328
        %v1533 = vpack.c.b16 %v1333, %v1329
        %v1534 = vpack.c.b16 %v1334, %v1330
        %v1535 = vpack.c.b16 %v1339, %v1335
        %v1536 = vpack.c.b16 %v1340, %v1336
        %v1537 = vpack.c.b16 %v1341, %v1337
        %v1538 = vpack.c.b16 %v1342, %v1338
        %vm1735 = vcmask 130048
        %v1737 = vsel %vm1735, %v748, 0
        %1739 = vmatprep.subr.bf16.mxu0 %v1372
        %1740 = vmatpush1.bf16.msra.mxu0 %v1371
        %1741 = vmatprep.subr.bf16.mxu0 %v1368
        %1742 = vmatpush1.bf16.msra.mxu0 %v1367
        %1743 = vmatprep.subr.bf16.mxu0 %v1364
        %1744 = vmatpush1.bf16.msra.mxu0 %v1363
        %1745 = vmatprep.subr.bf16.mxu0 %v1360
        %1746 = vmatpush1.bf16.msra.mxu0 %v1359
        %1747 = vmatprep.subr.bf16.mxu0 %v1356
        %1748 = vmatpush1.bf16.msra.mxu0 %v1355
        %1749 = vmatprep.subr.bf16.mxu0 %v1352
        %1750 = vmatpush1.bf16.msra.mxu0 %v1351
        %1751 = vmatprep.subr.bf16.mxu0 %v1348
        %1752 = vmatpush1.bf16.msra.mxu0 %v1347
        %1753 = vmatprep.subr.bf16.mxu0 %v1344
        %1754 = vmatpush1.bf16.msra.mxu0 %v1343
        %1755 = vmatprep.subr.bf16.mxu0 %v1404
        %1756 = vmatpush2.bf16.msra.mxu0 %v1403
        %1757 = vmatprep.subr.bf16.mxu0 %v1400
        %1758 = vmatpush2.bf16.msra.mxu0 %v1399
        %1759 = vmatprep.subr.bf16.mxu0 %v1396
        %1760 = vmatpush2.bf16.msra.mxu0 %v1395
        %1761 = vmatprep.subr.bf16.mxu0 %v1392
        %1762 = vmatpush2.bf16.msra.mxu0 %v1391
        %1763 = vmatprep.subr.bf16.mxu0 %v1388
        %1764 = vmatpush2.bf16.msra.mxu0 %v1387
        %1765 = vmatprep.subr.bf16.mxu0 %v1384
        %1766 = vmatpush2.bf16.msra.mxu0 %v1383
        %1767 = vmatprep.subr.bf16.mxu0 %v1380
        %1768 = vmatpush2.bf16.msra.mxu0 %v1379
        %1769 = vmatprep.subr.bf16.mxu0 %v1376
        %1770 = vmatpush2.bf16.msra.mxu0 %v1375
        %1771 = vmatprep.mubr.bf16.mxu0 %v743
        %1772 = vmatmul.mubr.bf16.gmra.mxu0 %v742
        %v1773 = vpop.f32.mrf.mxu0
        %v1774 = vadd.f32 %v703, %v1773
        %v1775 = vpop.f32.mrf.mxu0
        %v1776 = vadd.f32 %v707, %v1775
        %v1777 = vpop.f32.mrf.mxu0
        %v1778 = vadd.f32 %v703, %v1777
        %v1779 = vpop.f32.mrf.mxu0
        %v1780 = vadd.f32 %v707, %v1779
        %1781 = vdwg.mxu0
        %1782 = vmatprep.subr.bf16.mxu0 %v1436
        %1783 = vmatpush1.bf16.msra.mxu0 %v1435
        %1784 = vmatprep.subr.bf16.mxu0 %v1432
        %1785 = vmatpush1.bf16.msra.mxu0 %v1431
        %1786 = vmatprep.subr.bf16.mxu0 %v1428
        %1787 = vmatpush1.bf16.msra.mxu0 %v1427
        %1788 = vmatprep.subr.bf16.mxu0 %v1424
        %1789 = vmatpush1.bf16.msra.mxu0 %v1423
        %1790 = vmatprep.subr.bf16.mxu0 %v1420
        %1791 = vmatpush1.bf16.msra.mxu0 %v1419
        %1792 = vmatprep.subr.bf16.mxu0 %v1416
        %1793 = vmatpush1.bf16.msra.mxu0 %v1415
        %1794 = vmatprep.subr.bf16.mxu0 %v1412
        %1795 = vmatpush1.bf16.msra.mxu0 %v1411
        %1796 = vmatprep.subr.bf16.mxu0 %v1408
        %1797 = vmatpush1.bf16.msra.mxu0 %v1407
        %1798 = vmatprep.subr.bf16.mxu0 %v1468
        %1799 = vmatpush2.bf16.msra.mxu0 %v1467
        %1800 = vmatprep.subr.bf16.mxu0 %v1464
        %1801 = vmatpush2.bf16.msra.mxu0 %v1463
        %1802 = vmatprep.subr.bf16.mxu0 %v1460
        %1803 = vmatpush2.bf16.msra.mxu0 %v1459
        %1804 = vmatprep.subr.bf16.mxu0 %v1456
        %1805 = vmatpush2.bf16.msra.mxu0 %v1455
        %1806 = vmatprep.subr.bf16.mxu0 %v1452
        %1807 = vmatpush2.bf16.msra.mxu0 %v1451
        %1808 = vmatprep.subr.bf16.mxu0 %v1448
        %1809 = vmatpush2.bf16.msra.mxu0 %v1447
        %1810 = vmatprep.subr.bf16.mxu0 %v1444
        %1811 = vmatpush2.bf16.msra.mxu0 %v1443
        %1812 = vmatprep.subr.bf16.mxu0 %v1440
        %1813 = vmatpush2.bf16.msra.mxu0 %v1439
        %1814 = vmatprep.mubr.bf16.mxu0 %v745
        %1815 = vmatmul.mubr.bf16.gmra.mxu0 %v744
        %v1816 = vpop.f32.mrf.mxu0
        %v1817 = vadd.f32 %v1774, %v1816
        %v1818 = vpop.f32.mrf.mxu0
        %v1819 = vadd.f32 %v1776, %v1818
        %v1820 = vpop.f32.mrf.mxu0
        %v1821 = vadd.f32 %v1778, %v1820
        %v1822 = vpop.f32.mrf.mxu0
        %v1823 = vadd.f32 %v1780, %v1822
        %1824 = vdwg.mxu0
        %1825 = vmatprep.subr.bf16.mxu0 %v1500
        %1826 = vmatpush1.bf16.msra.mxu0 %v1499
        %1827 = vmatprep.subr.bf16.mxu0 %v1496
        %1828 = vmatpush1.bf16.msra.mxu0 %v1495
        %1829 = vmatprep.subr.bf16.mxu0 %v1492
        %1830 = vmatpush1.bf16.msra.mxu0 %v1491
        %1831 = vmatprep.subr.bf16.mxu0 %v1488
        %1832 = vmatpush1.bf16.msra.mxu0 %v1487
        %1833 = vmatprep.subr.bf16.mxu0 %v1484
        %1834 = vmatpush1.bf16.msra.mxu0 %v1483
        %1835 = vmatprep.subr.bf16.mxu0 %v1480
        %1836 = vmatpush1.bf16.msra.mxu0 %v1479
        %1837 = vmatprep.subr.bf16.mxu0 %v1476
        %1838 = vmatpush1.bf16.msra.mxu0 %v1475
        %1839 = vmatprep.subr.bf16.mxu0 %v1472
        %1840 = vmatpush1.bf16.msra.mxu0 %v1471
        %1841 = vmatprep.subr.bf16.mxu0 %v1532
        %1842 = vmatpush2.bf16.msra.mxu0 %v1531
        %1843 = vmatprep.subr.bf16.mxu0 %v1528
        %1844 = vmatpush2.bf16.msra.mxu0 %v1527
        %1845 = vmatprep.subr.bf16.mxu0 %v1524
        %1846 = vmatpush2.bf16.msra.mxu0 %v1523
        %1847 = vmatprep.subr.bf16.mxu0 %v1520
        %1848 = vmatpush2.bf16.msra.mxu0 %v1519
        %1849 = vmatprep.subr.bf16.mxu0 %v1516
        %1850 = vmatpush2.bf16.msra.mxu0 %v1515
        %1851 = vmatprep.subr.bf16.mxu0 %v1512
        %1852 = vmatpush2.bf16.msra.mxu0 %v1511
        %1853 = vmatprep.subr.bf16.mxu0 %v1508
        %1854 = vmatpush2.bf16.msra.mxu0 %v1507
        %1855 = vmatprep.subr.bf16.mxu0 %v1504
        %1856 = vmatpush2.bf16.msra.mxu0 %v1503
        %1857 = vmatprep.mubr.bf16.mxu0 %v747
        %1858 = vmatmul.mubr.bf16.gmra.mxu0 %v746
        %v1859 = vpop.f32.mrf.mxu0
        %v1860 = vadd.f32 %v1817, %v1859
        %v1861 = vpop.f32.mrf.mxu0
        %v1862 = vadd.f32 %v1819, %v1861
        %v1863 = vpop.f32.mrf.mxu0
        %v1864 = vadd.f32 %v1821, %v1863
        %v1865 = vpop.f32.mrf.mxu0
        %v1866 = vadd.f32 %v1823, %v1865
        %1867 = vdwg.mxu0
        %1868 = vmatprep.subr.bf16.mxu0 0
        %1869 = vmatpush1.bf16.msra.mxu0 0
        %1870 = vmatprep.subr.bf16.mxu0 0
        %1871 = vmatpush1.bf16.msra.mxu0 0
        %1872 = vmatprep.subr.bf16.mxu0 0
        %1873 = vmatpush1.bf16.msra.mxu0 0
        %1874 = vmatprep.subr.bf16.mxu0 0
        %1875 = vmatpush1.bf16.msra.mxu0 0
        %1876 = vmatprep.subr.bf16.mxu0 0
        %1877 = vmatpush1.bf16.msra.mxu0 0
        %1878 = vmatprep.subr.bf16.mxu0 0
        %1879 = vmatpush1.bf16.msra.mxu0 0
        %1880 = vmatprep.subr.bf16.mxu0 0
        %1881 = vmatpush1.bf16.msra.mxu0 0
        %1882 = vmatprep.subr.bf16.mxu0 %v1536
        %1883 = vmatpush1.bf16.msra.mxu0 %v1535
        %1884 = vmatprep.subr.bf16.mxu0 0
        %1885 = vmatpush2.bf16.msra.mxu0 0
        %1886 = vmatprep.subr.bf16.mxu0 0
        %1887 = vmatpush2.bf16.msra.mxu0 0
        %1888 = vmatprep.subr.bf16.mxu0 0
        %1889 = vmatpush2.bf16.msra.mxu0 0
        %1890 = vmatprep.subr.bf16.mxu0 0
        %1891 = vmatpush2.bf16.msra.mxu0 0
        %1892 = vmatprep.subr.bf16.mxu0 0
        %1893 = vmatpush2.bf16.msra.mxu0 0
        %1894 = vmatprep.subr.bf16.mxu0 0
        %1895 = vmatpush2.bf16.msra.mxu0 0
        %1896 = vmatprep.subr.bf16.mxu0 0
        %1897 = vmatpush2.bf16.msra.mxu0 0
        %1898 = vmatprep.subr.bf16.mxu0 0
        %1899 = vmatpush2.bf16.msra.mxu0 0
        %1900 = vmatprep.mubr.bf16.mxu0 0
        %1901 = vmatmul.mubr.bf16.gmra.mxu0 %v1737
        %v1902 = vpop.f32.mrf.mxu0
        %v1903 = vadd.f32 %v1860, %v1902
        %v1904 = vpop.f32.mrf.mxu0
        %v1905 = vadd.f32 %v1862, %v1904
        %v1906 = vpop.f32.mrf.mxu0
        %v1907 = vadd.f32 %v1864, %v1906
        %v1908 = vpop.f32.mrf.mxu0
        %v1909 = vadd.f32 %v1866, %v1908
        %1910 = vdwg.mxu0
        %1911 = vmatprep.subr.bf16.mxu0 %v1374
        %1912 = vmatpush1.bf16.msra.mxu0 %v1373
        %1913 = vmatprep.subr.bf16.mxu0 %v1370
        %1914 = vmatpush1.bf16.msra.mxu0 %v1369
        %1915 = vmatprep.subr.bf16.mxu0 %v1366
        %1916 = vmatpush1.bf16.msra.mxu0 %v1365
        %1917 = vmatprep.subr.bf16.mxu0 %v1362
        %1918 = vmatpush1.bf16.msra.mxu0 %v1361
        %1919 = vmatprep.subr.bf16.mxu0 %v1358
        %1920 = vmatpush1.bf16.msra.mxu0 %v1357
        %1921 = vmatprep.subr.bf16.mxu0 %v1354
        %1922 = vmatpush1.bf16.msra.mxu0 %v1353
        %1923 = vmatprep.subr.bf16.mxu0 %v1350
        %1924 = vmatpush1.bf16.msra.mxu0 %v1349
        %1925 = vmatprep.subr.bf16.mxu0 %v1346
        %1926 = vmatpush1.bf16.msra.mxu0 %v1345
        %1927 = vmatprep.subr.bf16.mxu0 %v1406
        %1928 = vmatpush2.bf16.msra.mxu0 %v1405
        %1929 = vmatprep.subr.bf16.mxu0 %v1402
        %1930 = vmatpush2.bf16.msra.mxu0 %v1401
        %1931 = vmatprep.subr.bf16.mxu0 %v1398
        %1932 = vmatpush2.bf16.msra.mxu0 %v1397
        %1933 = vmatprep.subr.bf16.mxu0 %v1394
        %1934 = vmatpush2.bf16.msra.mxu0 %v1393
        %1935 = vmatprep.subr.bf16.mxu0 %v1390
        %1936 = vmatpush2.bf16.msra.mxu0 %v1389
        %1937 = vmatprep.subr.bf16.mxu0 %v1386
        %1938 = vmatpush2.bf16.msra.mxu0 %v1385
        %1939 = vmatprep.subr.bf16.mxu0 %v1382
        %1940 = vmatpush2.bf16.msra.mxu0 %v1381
        %1941 = vmatprep.subr.bf16.mxu0 %v1378
        %1942 = vmatpush2.bf16.msra.mxu0 %v1377
        %1943 = vmatprep.mubr.bf16.mxu0 %v743
        %1944 = vmatmul.mubr.bf16.gmra.mxu0 %v742
        %v1945 = vpop.f32.mrf.mxu0
        %v1946 = vadd.f32 %v711, %v1945
        %v1947 = vpop.f32.mrf.mxu0
        %v1948 = vadd.f32 %v715, %v1947
        %v1949 = vpop.f32.mrf.mxu0
        %v1950 = vadd.f32 %v711, %v1949
        %v1951 = vpop.f32.mrf.mxu0
        %v1952 = vadd.f32 %v715, %v1951
        %1953 = vdwg.mxu0
        %1954 = vmatprep.subr.bf16.mxu0 %v1438
        %1955 = vmatpush1.bf16.msra.mxu0 %v1437
        %1956 = vmatprep.subr.bf16.mxu0 %v1434
        %1957 = vmatpush1.bf16.msra.mxu0 %v1433
        %1958 = vmatprep.subr.bf16.mxu0 %v1430
        %1959 = vmatpush1.bf16.msra.mxu0 %v1429
        %1960 = vmatprep.subr.bf16.mxu0 %v1426
        %1961 = vmatpush1.bf16.msra.mxu0 %v1425
        %1962 = vmatprep.subr.bf16.mxu0 %v1422
        %1963 = vmatpush1.bf16.msra.mxu0 %v1421
        %1964 = vmatprep.subr.bf16.mxu0 %v1418
        %1965 = vmatpush1.bf16.msra.mxu0 %v1417
        %1966 = vmatprep.subr.bf16.mxu0 %v1414
        %1967 = vmatpush1.bf16.msra.mxu0 %v1413
        %1968 = vmatprep.subr.bf16.mxu0 %v1410
        %1969 = vmatpush1.bf16.msra.mxu0 %v1409
        %1970 = vmatprep.subr.bf16.mxu0 %v1470
        %1971 = vmatpush2.bf16.msra.mxu0 %v1469
        %1972 = vmatprep.subr.bf16.mxu0 %v1466
        %1973 = vmatpush2.bf16.msra.mxu0 %v1465
        %1974 = vmatprep.subr.bf16.mxu0 %v1462
        %1975 = vmatpush2.bf16.msra.mxu0 %v1461
        %1976 = vmatprep.subr.bf16.mxu0 %v1458
        %1977 = vmatpush2.bf16.msra.mxu0 %v1457
        %1978 = vmatprep.subr.bf16.mxu0 %v1454
        %1979 = vmatpush2.bf16.msra.mxu0 %v1453
        %1980 = vmatprep.subr.bf16.mxu0 %v1450
        %1981 = vmatpush2.bf16.msra.mxu0 %v1449
        %1982 = vmatprep.subr.bf16.mxu0 %v1446
        %1983 = vmatpush2.bf16.msra.mxu0 %v1445
        %1984 = vmatprep.subr.bf16.mxu0 %v1442
        %1985 = vmatpush2.bf16.msra.mxu0 %v1441
        %1986 = vmatprep.mubr.bf16.mxu0 %v745
        %1987 = vmatmul.mubr.bf16.gmra.mxu0 %v744
        %v1988 = vpop.f32.mrf.mxu0
        %v1989 = vadd.f32 %v1946, %v1988
        %v1990 = vpop.f32.mrf.mxu0
        %v1991 = vadd.f32 %v1948, %v1990
        %v1992 = vpop.f32.mrf.mxu0
        %v1993 = vadd.f32 %v1950, %v1992
        %v1994 = vpop.f32.mrf.mxu0
        %v1995 = vadd.f32 %v1952, %v1994
        %1996 = vdwg.mxu0
        %1997 = vmatprep.subr.bf16.mxu0 %v1502
        %1998 = vmatpush1.bf16.msra.mxu0 %v1501
        %1999 = vmatprep.subr.bf16.mxu0 %v1498
        %2000 = vmatpush1.bf16.msra.mxu0 %v1497
        %2001 = vmatprep.subr.bf16.mxu0 %v1494
        %2002 = vmatpush1.bf16.msra.mxu0 %v1493
        %2003 = vmatprep.subr.bf16.mxu0 %v1490
        %2004 = vmatpush1.bf16.msra.mxu0 %v1489
        %2005 = vmatprep.subr.bf16.mxu0 %v1486
        %2006 = vmatpush1.bf16.msra.mxu0 %v1485
        %2007 = vmatprep.subr.bf16.mxu0 %v1482
        %2008 = vmatpush1.bf16.msra.mxu0 %v1481
        %2009 = vmatprep.subr.bf16.mxu0 %v1478
        %2010 = vmatpush1.bf16.msra.mxu0 %v1477
        %2011 = vmatprep.subr.bf16.mxu0 %v1474
        %2012 = vmatpush1.bf16.msra.mxu0 %v1473
        %2013 = vmatprep.subr.bf16.mxu0 %v1534
        %2014 = vmatpush2.bf16.msra.mxu0 %v1533
        %2015 = vmatprep.subr.bf16.mxu0 %v1530
        %2016 = vmatpush2.bf16.msra.mxu0 %v1529
        %2017 = vmatprep.subr.bf16.mxu0 %v1526
        %2018 = vmatpush2.bf16.msra.mxu0 %v1525
        %2019 = vmatprep.subr.bf16.mxu0 %v1522
        %2020 = vmatpush2.bf16.msra.mxu0 %v1521
        %2021 = vmatprep.subr.bf16.mxu0 %v1518
        %2022 = vmatpush2.bf16.msra.mxu0 %v1517
        %2023 = vmatprep.subr.bf16.mxu0 %v1514
        %2024 = vmatpush2.bf16.msra.mxu0 %v1513
        %2025 = vmatprep.subr.bf16.mxu0 %v1510
        %2026 = vmatpush2.bf16.msra.mxu0 %v1509
        %2027 = vmatprep.subr.bf16.mxu0 %v1506
        %2028 = vmatpush2.bf16.msra.mxu0 %v1505
        %2029 = vmatprep.mubr.bf16.mxu0 %v747
        %2030 = vmatmul.mubr.bf16.gmra.mxu0 %v746
        %v2031 = vpop.f32.mrf.mxu0
        %v2032 = vadd.f32 %v1989, %v2031
        %v2033 = vpop.f32.mrf.mxu0
        %v2034 = vadd.f32 %v1991, %v2033
        %v2035 = vpop.f32.mrf.mxu0
        %v2036 = vadd.f32 %v1993, %v2035
        %v2037 = vpop.f32.mrf.mxu0
        %v2038 = vadd.f32 %v1995, %v2037
        %2039 = vdwg.mxu0
        %2040 = vmatprep.subr.bf16.mxu0 0
        %2041 = vmatpush1.bf16.msra.mxu0 0
        %2042 = vmatprep.subr.bf16.mxu0 0
        %2043 = vmatpush1.bf16.msra.mxu0 0
        %2044 = vmatprep.subr.bf16.mxu0 0
        %2045 = vmatpush1.bf16.msra.mxu0 0
        %2046 = vmatprep.subr.bf16.mxu0 0
        %2047 = vmatpush1.bf16.msra.mxu0 0
        %2048 = vmatprep.subr.bf16.mxu0 0
        %2049 = vmatpush1.bf16.msra.mxu0 0
        %2050 = vmatprep.subr.bf16.mxu0 0
        %2051 = vmatpush1.bf16.msra.mxu0 0
        %2052 = vmatprep.subr.bf16.mxu0 0
        %2053 = vmatpush1.bf16.msra.mxu0 0
        %2054 = vmatprep.subr.bf16.mxu0 %v1538
        %2055 = vmatpush1.bf16.msra.mxu0 %v1537
        %2056 = vmatprep.subr.bf16.mxu0 0
        %2057 = vmatpush2.bf16.msra.mxu0 0
        %2058 = vmatprep.subr.bf16.mxu0 0
        %2059 = vmatpush2.bf16.msra.mxu0 0
        %2060 = vmatprep.subr.bf16.mxu0 0
        %2061 = vmatpush2.bf16.msra.mxu0 0
        %2062 = vmatprep.subr.bf16.mxu0 0
        %2063 = vmatpush2.bf16.msra.mxu0 0
        %2064 = vmatprep.subr.bf16.mxu0 0
        %2065 = vmatpush2.bf16.msra.mxu0 0
        %2066 = vmatprep.subr.bf16.mxu0 0
        %2067 = vmatpush2.bf16.msra.mxu0 0
        %2068 = vmatprep.subr.bf16.mxu0 0
        %2069 = vmatpush2.bf16.msra.mxu0 0
        %2070 = vmatprep.subr.bf16.mxu0 0
        %2071 = vmatpush2.bf16.msra.mxu0 0
        %2072 = vmatprep.mubr.bf16.mxu0 0
        %2073 = vmatmul.mubr.bf16.gmra.mxu0 %v1737
        %v2074 = vpop.f32.mrf.mxu0
        %v2075 = vadd.f32 %v2032, %v2074
        %v2076 = vpop.f32.mrf.mxu0
        %v2077 = vadd.f32 %v2034, %v2076
        %v2078 = vpop.f32.mrf.mxu0
        %v2079 = vadd.f32 %v2036, %v2078
        %v2080 = vpop.f32.mrf.mxu0
        %v2081 = vadd.f32 %v2038, %v2080
        %2082 = vdwg.mxu0
        %v2083 = vmax.f32 %v1903, 0.0
        %v2084 = vmax.f32 %v1905, 0.0
        %v2085 = vmax.f32 %v2075, 0.0
        %v2086 = vmax.f32 %v2077, 0.0
        %v2087 = vmax.f32 %v1907, 0.0
        %v2088 = vmax.f32 %v1909, 0.0
        %v2089 = vmax.f32 %v2079, 0.0
        %v2090 = vmax.f32 %v2081, 0.0
        %v2091 = vpack.c.bf16 %v2087, %v2083
        %v2092 = vpack.c.bf16 %v2088, %v2084
        %v2093 = vpack.c.bf16 %v2089, %v2085
        %v2094 = vpack.c.bf16 %v2090, %v2086
        %v2095 = vld [vmem:[#allocation8] sm:$0xff]
        %v2096 = vld [vmem:[#allocation8 + $0x8] sm:$0xff]
        %v2097 = vld [vmem:[#allocation8 + $0x10] sm:$0xff]
        %v2098 = vld [vmem:[#allocation8 + $0x18] sm:$0xff]
        %v2099 = vld [vmem:[#allocation8 + $0x20] sm:$0xff]
        %v2100 = vld [vmem:[#allocation8 + $0x28] sm:$0xff]
        %v2101 = vld [vmem:[#allocation8 + $0x30] sm:$0xff]
        %v2102 = vld [vmem:[#allocation8 + $0x38] sm:$0xff]
        %v2103 = vld [vmem:[#allocation8 + $0x40] sm:$0xff]
        %v2104 = vld [vmem:[#allocation8 + $0x48] sm:$0xff]
        %v2105 = vld [vmem:[#allocation8 + $0x50] sm:$0xff]
        %v2106 = vld [vmem:[#allocation8 + $0x58] sm:$0xff]
        %v2107 = vld [vmem:[#allocation8 + $0x60] sm:$0xff]
        %v2108 = vld [vmem:[#allocation8 + $0x68] sm:$0xff]
        %v2109 = vld [vmem:[#allocation8 + $0x70] sm:$0xff]
        %v2110 = vld [vmem:[#allocation8 + $0x78] sm:$0xff]
        %v2111 = vld [vmem:[#allocation8 + $0x80] sm:$0xff]
        %v2112 = vld [vmem:[#allocation8 + $0x88] sm:$0xff]
        %v2113 = vld [vmem:[#allocation8 + $0x90] sm:$0xff]
        %v2114 = vld [vmem:[#allocation8 + $0x98] sm:$0xff]
        %v2115 = vld [vmem:[#allocation8 + $0xa0] sm:$0xff]
        %v2116 = vld [vmem:[#allocation8 + $0xa8] sm:$0xff]
        %v2117 = vld [vmem:[#allocation8 + $0xb0] sm:$0xff]
        %v2118 = vld [vmem:[#allocation8 + $0xb8] sm:$0xff]
        %v2119 = vld [vmem:[#allocation8 + $0xc0] sm:$0xff]
        %v2120 = vld [vmem:[#allocation8 + $0xc8] sm:$0xff]
        %v2121 = vld [vmem:[#allocation8 + $0xd0] sm:$0xff]
        %v2122 = vld [vmem:[#allocation8 + $0xd8] sm:$0xff]
        %v2123 = vld [vmem:[#allocation8 + $0xe0] sm:$0xff]
        %v2124 = vld [vmem:[#allocation8 + $0xe8] sm:$0xff]
        %v2125 = vld [vmem:[#allocation8 + $0xf0] sm:$0xff]
        %v2126 = vld [vmem:[#allocation8 + $0xf8] sm:$0xff]
        %v2127 = vld [vmem:[#allocation8 + $0x100] sm:$0xff]
        %v2128 = vld [vmem:[#allocation8 + $0x108] sm:$0xff]
        %v2129 = vld [vmem:[#allocation8 + $0x110] sm:$0xff]
        %v2130 = vld [vmem:[#allocation8 + $0x118] sm:$0xff]
        %v2131 = vld [vmem:[#allocation8 + $0x120] sm:$0xff]
        %v2132 = vld [vmem:[#allocation8 + $0x128] sm:$0xff]
        %v2133 = vld [vmem:[#allocation8 + $0x130] sm:$0xff]
        %v2134 = vld [vmem:[#allocation8 + $0x138] sm:$0xff]
        %v2135 = vld [vmem:[#allocation8 + $0x140] sm:$0xff]
        %v2136 = vld [vmem:[#allocation8 + $0x148] sm:$0xff]
        %v2137 = vld [vmem:[#allocation8 + $0x150] sm:$0xff]
        %v2138 = vld [vmem:[#allocation8 + $0x158] sm:$0xff]
        %v2139 = vld [vmem:[#allocation8 + $0x160] sm:$0xff]
        %v2140 = vld [vmem:[#allocation8 + $0x168] sm:$0xff]
        %v2141 = vld [vmem:[#allocation8 + $0x170] sm:$0xff]
        %v2142 = vld [vmem:[#allocation8 + $0x178] sm:$0xff]
        %v2143 = vld [vmem:[#allocation8 + $0x180] sm:$0xff]
        %v2144 = vld [vmem:[#allocation8 + $0x188] sm:$0xff]
        %v2145 = vld [vmem:[#allocation8 + $0x190] sm:$0xff]
        %v2146 = vld [vmem:[#allocation8 + $0x198] sm:$0xff]
        %v2147 = vld [vmem:[#allocation8 + $0x1a0] sm:$0xff]
        %v2148 = vld [vmem:[#allocation8 + $0x1a8] sm:$0xff]
        %v2149 = vld [vmem:[#allocation8 + $0x1b0] sm:$0xff]
        %v2150 = vld [vmem:[#allocation8 + $0x1b8] sm:$0xff]
        %v2151 = vld [vmem:[#allocation8 + $0x1c0] sm:$0xff]
        %v2152 = vld [vmem:[#allocation8 + $0x1c8] sm:$0xff]
        %v2153 = vld [vmem:[#allocation8 + $0x1d0] sm:$0xff]
        %v2154 = vld [vmem:[#allocation8 + $0x1d8] sm:$0xff]
        %v2155 = vld [vmem:[#allocation8 + $0x1e0] sm:$0xff]
        %v2156 = vld [vmem:[#allocation8 + $0x1e8] sm:$0xff]
        %v2157 = vld [vmem:[#allocation8 + $0x1f0] sm:$0xff]
        %v2158 = vld [vmem:[#allocation8 + $0x1f8] sm:$0xff]
        %v2159 = vld [vmem:[%s4] sm:$0x3]
        %v2161 = vlaneseq
        %v2162 = vshrl.u32 %v2161, 7
        %v2163 = vsub.s32 0, %v2162
        %v2164 = vrot.slane %v2159, %v2163
        %v2165 = vlaneseq
        %v2166 = vshrl.u32 %v2165, 7
        %v2167 = vsub.s32 1, %v2166
        %v2168 = vrot.slane %v2159, %v2167
        %v2235 = vunpack.c.l.b16 %v2095
        %v2236 = vunpack.c.h.b16 %v2095
        %v2237 = vunpack.c.l.b16 %v2096
        %v2238 = vunpack.c.h.b16 %v2096
        %v2239 = vunpack.c.l.b16 %v2097
        %v2240 = vunpack.c.h.b16 %v2097
        %v2241 = vunpack.c.l.b16 %v2098
        %v2242 = vunpack.c.h.b16 %v2098
        %v2243 = vunpack.c.l.b16 %v2099
        %v2244 = vunpack.c.h.b16 %v2099
        %v2245 = vunpack.c.l.b16 %v2100
        %v2246 = vunpack.c.h.b16 %v2100
        %v2247 = vunpack.c.l.b16 %v2101
        %v2248 = vunpack.c.h.b16 %v2101
        %v2249 = vunpack.c.l.b16 %v2102
        %v2250 = vunpack.c.h.b16 %v2102
        %v2251 = vunpack.c.l.b16 %v2103
        %v2252 = vunpack.c.h.b16 %v2103
        %v2253 = vunpack.c.l.b16 %v2104
        %v2254 = vunpack.c.h.b16 %v2104
        %v2255 = vunpack.c.l.b16 %v2105
        %v2256 = vunpack.c.h.b16 %v2105
        %v2257 = vunpack.c.l.b16 %v2106
        %v2258 = vunpack.c.h.b16 %v2106
        %v2259 = vunpack.c.l.b16 %v2107
        %v2260 = vunpack.c.h.b16 %v2107
        %v2261 = vunpack.c.l.b16 %v2108
        %v2262 = vunpack.c.h.b16 %v2108
        %v2263 = vunpack.c.l.b16 %v2109
        %v2264 = vunpack.c.h.b16 %v2109
        %v2265 = vunpack.c.l.b16 %v2110
        %v2266 = vunpack.c.h.b16 %v2110
        %v2267 = vunpack.c.l.b16 %v2111
        %v2268 = vunpack.c.h.b16 %v2111
        %v2269 = vunpack.c.l.b16 %v2112
        %v2270 = vunpack.c.h.b16 %v2112
        %v2271 = vunpack.c.l.b16 %v2113
        %v2272 = vunpack.c.h.b16 %v2113
        %v2273 = vunpack.c.l.b16 %v2114
        %v2274 = vunpack.c.h.b16 %v2114
        %v2275 = vunpack.c.l.b16 %v2115
        %v2276 = vunpack.c.h.b16 %v2115
        %v2277 = vunpack.c.l.b16 %v2116
        %v2278 = vunpack.c.h.b16 %v2116
        %v2279 = vunpack.c.l.b16 %v2117
        %v2280 = vunpack.c.h.b16 %v2117
        %v2281 = vunpack.c.l.b16 %v2118
        %v2282 = vunpack.c.h.b16 %v2118
        %v2283 = vunpack.c.l.b16 %v2119
        %v2284 = vunpack.c.h.b16 %v2119
        %v2285 = vunpack.c.l.b16 %v2120
        %v2286 = vunpack.c.h.b16 %v2120
        %v2287 = vunpack.c.l.b16 %v2121
        %v2288 = vunpack.c.h.b16 %v2121
        %v2289 = vunpack.c.l.b16 %v2122
        %v2290 = vunpack.c.h.b16 %v2122
        %v2291 = vunpack.c.l.b16 %v2123
        %v2292 = vunpack.c.h.b16 %v2123
        %v2293 = vunpack.c.l.b16 %v2124
        %v2294 = vunpack.c.h.b16 %v2124
        %v2295 = vunpack.c.l.b16 %v2125
        %v2296 = vunpack.c.h.b16 %v2125
        %v2297 = vunpack.c.l.b16 %v2126
        %v2298 = vunpack.c.h.b16 %v2126
        %v2299 = vunpack.c.l.b16 %v2127
        %v2300 = vunpack.c.h.b16 %v2127
        %v2301 = vunpack.c.l.b16 %v2128
        %v2302 = vunpack.c.h.b16 %v2128
        %v2303 = vunpack.c.l.b16 %v2129
        %v2304 = vunpack.c.h.b16 %v2129
        %v2305 = vunpack.c.l.b16 %v2130
        %v2306 = vunpack.c.h.b16 %v2130
        %v2307 = vunpack.c.l.b16 %v2131
        %v2308 = vunpack.c.h.b16 %v2131
        %v2309 = vunpack.c.l.b16 %v2132
        %v2310 = vunpack.c.h.b16 %v2132
        %v2311 = vunpack.c.l.b16 %v2133
        %v2312 = vunpack.c.h.b16 %v2133
        %v2313 = vunpack.c.l.b16 %v2134
        %v2314 = vunpack.c.h.b16 %v2134
        %v2315 = vunpack.c.l.b16 %v2135
        %v2316 = vunpack.c.h.b16 %v2135
        %v2317 = vunpack.c.l.b16 %v2136
        %v2318 = vunpack.c.h.b16 %v2136
        %v2319 = vunpack.c.l.b16 %v2137
        %v2320 = vunpack.c.h.b16 %v2137
        %v2321 = vunpack.c.l.b16 %v2138
        %v2322 = vunpack.c.h.b16 %v2138
        %v2323 = vunpack.c.l.b16 %v2139
        %v2324 = vunpack.c.h.b16 %v2139
        %v2325 = vunpack.c.l.b16 %v2140
        %v2326 = vunpack.c.h.b16 %v2140
        %v2327 = vunpack.c.l.b16 %v2141
        %v2328 = vunpack.c.h.b16 %v2141
        %v2329 = vunpack.c.l.b16 %v2142
        %v2330 = vunpack.c.h.b16 %v2142
        %v2331 = vunpack.c.l.b16 %v2143
        %v2332 = vunpack.c.h.b16 %v2143
        %v2333 = vunpack.c.l.b16 %v2144
        %v2334 = vunpack.c.h.b16 %v2144
        %v2335 = vunpack.c.l.b16 %v2145
        %v2336 = vunpack.c.h.b16 %v2145
        %v2337 = vunpack.c.l.b16 %v2146
        %v2338 = vunpack.c.h.b16 %v2146
        %v2339 = vunpack.c.l.b16 %v2147
        %v2340 = vunpack.c.h.b16 %v2147
        %v2341 = vunpack.c.l.b16 %v2148
        %v2342 = vunpack.c.h.b16 %v2148
        %v2343 = vunpack.c.l.b16 %v2149
        %v2344 = vunpack.c.h.b16 %v2149
        %v2345 = vunpack.c.l.b16 %v2150
        %v2346 = vunpack.c.h.b16 %v2150
        %v2347 = vunpack.c.l.b16 %v2151
        %v2348 = vunpack.c.h.b16 %v2151
        %v2349 = vunpack.c.l.b16 %v2152
        %v2350 = vunpack.c.h.b16 %v2152
        %v2351 = vunpack.c.l.b16 %v2153
        %v2352 = vunpack.c.h.b16 %v2153
        %v2353 = vunpack.c.l.b16 %v2154
        %v2354 = vunpack.c.h.b16 %v2154
        %v2355 = vunpack.c.l.b16 %v2155
        %v2356 = vunpack.c.h.b16 %v2155
        %v2357 = vunpack.c.l.b16 %v2156
        %v2358 = vunpack.c.h.b16 %v2156
        %v2359 = vunpack.c.l.b16 %v2157
        %v2360 = vunpack.c.h.b16 %v2157
        %v2361 = vunpack.c.l.b16 %v2158
        %v2362 = vunpack.c.h.b16 %v2158
        %v2363 = vpack.c.b16 %v2237, %v2235
        %v2364 = vpack.c.b16 %v2238, %v2236
        %v2365 = vpack.c.b16 %v2241, %v2239
        %v2366 = vpack.c.b16 %v2242, %v2240
        %v2367 = vpack.c.b16 %v2245, %v2243
        %v2368 = vpack.c.b16 %v2246, %v2244
        %v2369 = vpack.c.b16 %v2249, %v2247
        %v2370 = vpack.c.b16 %v2250, %v2248
        %v2371 = vpack.c.b16 %v2253, %v2251
        %v2372 = vpack.c.b16 %v2254, %v2252
        %v2373 = vpack.c.b16 %v2257, %v2255
        %v2374 = vpack.c.b16 %v2258, %v2256
        %v2375 = vpack.c.b16 %v2261, %v2259
        %v2376 = vpack.c.b16 %v2262, %v2260
        %v2377 = vpack.c.b16 %v2265, %v2263
        %v2378 = vpack.c.b16 %v2266, %v2264
        %v2379 = vpack.c.b16 %v2269, %v2267
        %v2380 = vpack.c.b16 %v2270, %v2268
        %v2381 = vpack.c.b16 %v2273, %v2271
        %v2382 = vpack.c.b16 %v2274, %v2272
        %v2383 = vpack.c.b16 %v2277, %v2275
        %v2384 = vpack.c.b16 %v2278, %v2276
        %v2385 = vpack.c.b16 %v2281, %v2279
        %v2386 = vpack.c.b16 %v2282, %v2280
        %v2387 = vpack.c.b16 %v2285, %v2283
        %v2388 = vpack.c.b16 %v2286, %v2284
        %v2389 = vpack.c.b16 %v2289, %v2287
        %v2390 = vpack.c.b16 %v2290, %v2288
        %v2391 = vpack.c.b16 %v2293, %v2291
        %v2392 = vpack.c.b16 %v2294, %v2292
        %v2393 = vpack.c.b16 %v2297, %v2295
        %v2394 = vpack.c.b16 %v2298, %v2296
        %v2395 = vpack.c.b16 %v2301, %v2299
        %v2396 = vpack.c.b16 %v2302, %v2300
        %v2397 = vpack.c.b16 %v2305, %v2303
        %v2398 = vpack.c.b16 %v2306, %v2304
        %v2399 = vpack.c.b16 %v2309, %v2307
        %v2400 = vpack.c.b16 %v2310, %v2308
        %v2401 = vpack.c.b16 %v2313, %v2311
        %v2402 = vpack.c.b16 %v2314, %v2312
        %v2403 = vpack.c.b16 %v2317, %v2315
        %v2404 = vpack.c.b16 %v2318, %v2316
        %v2405 = vpack.c.b16 %v2321, %v2319
        %v2406 = vpack.c.b16 %v2322, %v2320
        %v2407 = vpack.c.b16 %v2325, %v2323
        %v2408 = vpack.c.b16 %v2326, %v2324
        %v2409 = vpack.c.b16 %v2329, %v2327
        %v2410 = vpack.c.b16 %v2330, %v2328
        %v2411 = vpack.c.b16 %v2333, %v2331
        %v2412 = vpack.c.b16 %v2334, %v2332
        %v2413 = vpack.c.b16 %v2337, %v2335
        %v2414 = vpack.c.b16 %v2338, %v2336
        %v2415 = vpack.c.b16 %v2341, %v2339
        %v2416 = vpack.c.b16 %v2342, %v2340
        %v2417 = vpack.c.b16 %v2345, %v2343
        %v2418 = vpack.c.b16 %v2346, %v2344
        %v2419 = vpack.c.b16 %v2349, %v2347
        %v2420 = vpack.c.b16 %v2350, %v2348
        %v2421 = vpack.c.b16 %v2353, %v2351
        %v2422 = vpack.c.b16 %v2354, %v2352
        %v2423 = vpack.c.b16 %v2357, %v2355
        %v2424 = vpack.c.b16 %v2358, %v2356
        %v2425 = vpack.c.b16 %v2361, %v2359
        %v2426 = vpack.c.b16 %v2362, %v2360
        %2491 = vmatprep.subr.bf16.mxu0 %v2378
        %2492 = vmatpush1.bf16.msra.mxu0 %v2377
        %2493 = vmatprep.subr.bf16.mxu0 %v2376
        %2494 = vmatpush1.bf16.msra.mxu0 %v2375
        %2495 = vmatprep.subr.bf16.mxu0 %v2374
        %2496 = vmatpush1.bf16.msra.mxu0 %v2373
        %2497 = vmatprep.subr.bf16.mxu0 %v2372
        %2498 = vmatpush1.bf16.msra.mxu0 %v2371
        %2499 = vmatprep.subr.bf16.mxu0 %v2370
        %2500 = vmatpush1.bf16.msra.mxu0 %v2369
        %2501 = vmatprep.subr.bf16.mxu0 %v2368
        %2502 = vmatpush1.bf16.msra.mxu0 %v2367
        %2503 = vmatprep.subr.bf16.mxu0 %v2366
        %2504 = vmatpush1.bf16.msra.mxu0 %v2365
        %2505 = vmatprep.subr.bf16.mxu0 %v2364
        %2506 = vmatpush1.bf16.msra.mxu0 %v2363
        %2507 = vmatprep.subr.bf16.mxu0 %v2394
        %2508 = vmatpush2.bf16.msra.mxu0 %v2393
        %2509 = vmatprep.subr.bf16.mxu0 %v2392
        %2510 = vmatpush2.bf16.msra.mxu0 %v2391
        %2511 = vmatprep.subr.bf16.mxu0 %v2390
        %2512 = vmatpush2.bf16.msra.mxu0 %v2389
        %2513 = vmatprep.subr.bf16.mxu0 %v2388
        %2514 = vmatpush2.bf16.msra.mxu0 %v2387
        %2515 = vmatprep.subr.bf16.mxu0 %v2386
        %2516 = vmatpush2.bf16.msra.mxu0 %v2385
        %2517 = vmatprep.subr.bf16.mxu0 %v2384
        %2518 = vmatpush2.bf16.msra.mxu0 %v2383
        %2519 = vmatprep.subr.bf16.mxu0 %v2382
        %2520 = vmatpush2.bf16.msra.mxu0 %v2381
        %2521 = vmatprep.subr.bf16.mxu0 %v2380
        %2522 = vmatpush2.bf16.msra.mxu0 %v2379
        %2523 = vmatprep.mubr.bf16.mxu0 %v2092
        %2524 = vmatmul.mubr.bf16.gmra.mxu0 %v2091
        %v2525 = vpop.f32.mrf.mxu0
        %v2526 = vadd.f32 %v2164, %v2525
        %v2527 = vpop.f32.mrf.mxu0
        %v2528 = vadd.f32 %v2168, %v2527
        %v2529 = vpop.f32.mrf.mxu0
        %v2530 = vadd.f32 %v2164, %v2529
        %v2531 = vpop.f32.mrf.mxu0
        %v2532 = vadd.f32 %v2168, %v2531
        %2533 = vdwg.mxu0
        %2534 = vmatprep.subr.bf16.mxu0 %v2410
        %2535 = vmatpush1.bf16.msra.mxu0 %v2409
        %2536 = vmatprep.subr.bf16.mxu0 %v2408
        %2537 = vmatpush1.bf16.msra.mxu0 %v2407
        %2538 = vmatprep.subr.bf16.mxu0 %v2406
        %2539 = vmatpush1.bf16.msra.mxu0 %v2405
        %2540 = vmatprep.subr.bf16.mxu0 %v2404
        %2541 = vmatpush1.bf16.msra.mxu0 %v2403
        %2542 = vmatprep.subr.bf16.mxu0 %v2402
        %2543 = vmatpush1.bf16.msra.mxu0 %v2401
        %2544 = vmatprep.subr.bf16.mxu0 %v2400
        %2545 = vmatpush1.bf16.msra.mxu0 %v2399
        %2546 = vmatprep.subr.bf16.mxu0 %v2398
        %2547 = vmatpush1.bf16.msra.mxu0 %v2397
        %2548 = vmatprep.subr.bf16.mxu0 %v2396
        %2549 = vmatpush1.bf16.msra.mxu0 %v2395
        %2550 = vmatprep.subr.bf16.mxu0 %v2426
        %2551 = vmatpush2.bf16.msra.mxu0 %v2425
        %2552 = vmatprep.subr.bf16.mxu0 %v2424
        %2553 = vmatpush2.bf16.msra.mxu0 %v2423
        %2554 = vmatprep.subr.bf16.mxu0 %v2422
        %2555 = vmatpush2.bf16.msra.mxu0 %v2421
        %2556 = vmatprep.subr.bf16.mxu0 %v2420
        %2557 = vmatpush2.bf16.msra.mxu0 %v2419
        %2558 = vmatprep.subr.bf16.mxu0 %v2418
        %2559 = vmatpush2.bf16.msra.mxu0 %v2417
        %2560 = vmatprep.subr.bf16.mxu0 %v2416
        %2561 = vmatpush2.bf16.msra.mxu0 %v2415
        %2562 = vmatprep.subr.bf16.mxu0 %v2414
        %2563 = vmatpush2.bf16.msra.mxu0 %v2413
        %2564 = vmatprep.subr.bf16.mxu0 %v2412
        %2565 = vmatpush2.bf16.msra.mxu0 %v2411
        %2566 = vmatprep.mubr.bf16.mxu0 %v2094
        %2567 = vmatmul.mubr.bf16.gmra.mxu0 %v2093
        %v2568 = vpop.f32.mrf.mxu0
        %v2569 = vadd.f32 %v2526, %v2568
        %v2570 = vpop.f32.mrf.mxu0
        %v2571 = vadd.f32 %v2528, %v2570
        %v2572 = vpop.f32.mrf.mxu0
        %v2573 = vadd.f32 %v2530, %v2572
        %v2574 = vpop.f32.mrf.mxu0
        %v2575 = vadd.f32 %v2532, %v2574
        %2576 = vdwg.mxu0
        %v2577 = vmax.f32 %v2569, 0.0
        %v2578 = vmax.f32 %v2571, 0.0
        %v2579 = vmax.f32 %v2573, 0.0
        %v2580 = vmax.f32 %v2575, 0.0
        %v2581 = vpack.c.bf16 %v2579, %v2577
        %v2582 = vpack.c.bf16 %v2580, %v2578
        %v2583 = vld [vmem:[#allocation10] sm:$0xf]
        %v2584 = vld [vmem:[#allocation10 + $0x4] sm:$0xf]
        %v2585 = vld [vmem:[#allocation10 + $0x8] sm:$0xf]
        %v2586 = vld [vmem:[#allocation10 + $0xc] sm:$0xf]
        %v2587 = vld [vmem:[#allocation10 + $0x10] sm:$0xf]
        %v2588 = vld [vmem:[#allocation10 + $0x14] sm:$0xf]
        %v2589 = vld [vmem:[#allocation10 + $0x18] sm:$0xf]
        %v2590 = vld [vmem:[#allocation10 + $0x1c] sm:$0xf]
        %v2591 = vld [vmem:[#allocation10 + $0x20] sm:$0xf]
        %v2592 = vld [vmem:[#allocation10 + $0x24] sm:$0xf]
        %v2593 = vld [vmem:[#allocation10 + $0x28] sm:$0xf]
        %v2594 = vld [vmem:[#allocation10 + $0x2c] sm:$0xf]
        %v2595 = vld [vmem:[#allocation10 + $0x30] sm:$0xf]
        %v2596 = vld [vmem:[#allocation10 + $0x34] sm:$0xf]
        %v2597 = vld [vmem:[#allocation10 + $0x38] sm:$0xf]
        %v2598 = vld [vmem:[#allocation10 + $0x3c] sm:$0xf]
        %v2599 = vld [vmem:[#allocation10 + $0x40] sm:$0xf]
        %v2600 = vld [vmem:[#allocation10 + $0x44] sm:$0xf]
        %v2601 = vld [vmem:[#allocation10 + $0x48] sm:$0xf]
        %v2602 = vld [vmem:[#allocation10 + $0x4c] sm:$0xf]
        %v2603 = vld [vmem:[#allocation10 + $0x50] sm:$0xf]
        %v2604 = vld [vmem:[#allocation10 + $0x54] sm:$0xf]
        %v2605 = vld [vmem:[#allocation10 + $0x58] sm:$0xf]
        %v2606 = vld [vmem:[#allocation10 + $0x5c] sm:$0xf]
        %v2607 = vld [vmem:[#allocation10 + $0x60] sm:$0xf]
        %v2608 = vld [vmem:[#allocation10 + $0x64] sm:$0xf]
        %v2609 = vld [vmem:[#allocation10 + $0x68] sm:$0xf]
        %v2610 = vld [vmem:[#allocation10 + $0x6c] sm:$0xf]
        %v2611 = vld [vmem:[#allocation10 + $0x70] sm:$0xf]
        %v2612 = vld [vmem:[#allocation10 + $0x74] sm:$0xf]
        %v2613 = vld [vmem:[#allocation10 + $0x78] sm:$0xf]
        %v2614 = vld [vmem:[#allocation10 + $0x7c] sm:$0xf]
        %v2615 = vld [vmem:[%s6] sm:$0x1]
        %v2617 = vlaneseq
        %v2618 = vshrl.u32 %v2617, 7
        %v2619 = vsub.s32 0, %v2618
        %v2620 = vrot.slane %v2615, %v2619
        %v2654 = vunpack.c.l.b16 %v2583
        %v2655 = vunpack.c.l.b16 %v2584
        %v2656 = vunpack.c.l.b16 %v2585
        %v2657 = vunpack.c.l.b16 %v2586
        %v2658 = vunpack.c.l.b16 %v2587
        %v2659 = vunpack.c.l.b16 %v2588
        %v2660 = vunpack.c.l.b16 %v2589
        %v2661 = vunpack.c.l.b16 %v2590
        %v2662 = vunpack.c.l.b16 %v2591
        %v2663 = vunpack.c.l.b16 %v2592
        %v2664 = vunpack.c.l.b16 %v2593
        %v2665 = vunpack.c.l.b16 %v2594
        %v2666 = vunpack.c.l.b16 %v2595
        %v2667 = vunpack.c.l.b16 %v2596
        %v2668 = vunpack.c.l.b16 %v2597
        %v2669 = vunpack.c.l.b16 %v2598
        %v2670 = vunpack.c.l.b16 %v2599
        %v2671 = vunpack.c.l.b16 %v2600
        %v2672 = vunpack.c.l.b16 %v2601
        %v2673 = vunpack.c.l.b16 %v2602
        %v2674 = vunpack.c.l.b16 %v2603
        %v2675 = vunpack.c.l.b16 %v2604
        %v2676 = vunpack.c.l.b16 %v2605
        %v2677 = vunpack.c.l.b16 %v2606
        %v2678 = vunpack.c.l.b16 %v2607
        %v2679 = vunpack.c.l.b16 %v2608
        %v2680 = vunpack.c.l.b16 %v2609
        %v2681 = vunpack.c.l.b16 %v2610
        %v2682 = vunpack.c.l.b16 %v2611
        %v2683 = vunpack.c.l.b16 %v2612
        %v2684 = vunpack.c.l.b16 %v2613
        %v2685 = vunpack.c.l.b16 %v2614
        %v2686 = vpack.c.b16 %v2655, %v2654
        %v2687 = vpack.c.b16 %v2657, %v2656
        %v2688 = vpack.c.b16 %v2659, %v2658
        %v2689 = vpack.c.b16 %v2661, %v2660
        %v2690 = vpack.c.b16 %v2663, %v2662
        %v2691 = vpack.c.b16 %v2665, %v2664
        %v2692 = vpack.c.b16 %v2667, %v2666
        %v2693 = vpack.c.b16 %v2669, %v2668
        %v2694 = vpack.c.b16 %v2671, %v2670
        %v2695 = vpack.c.b16 %v2673, %v2672
        %v2696 = vpack.c.b16 %v2675, %v2674
        %v2697 = vpack.c.b16 %v2677, %v2676
        %v2698 = vpack.c.b16 %v2679, %v2678
        %v2699 = vpack.c.b16 %v2681, %v2680
        %v2700 = vpack.c.b16 %v2683, %v2682
        %v2701 = vpack.c.b16 %v2685, %v2684
        %2718 = vmatprep.subr.bf16.mxu0 0
        %2719 = vmatpush1.bf16.msra.mxu0 %v2693
        %2720 = vmatprep.subr.bf16.mxu0 0
        %2721 = vmatpush1.bf16.msra.mxu0 %v2692
        %2722 = vmatprep.subr.bf16.mxu0 0
        %2723 = vmatpush1.bf16.msra.mxu0 %v2691
        %2724 = vmatprep.subr.bf16.mxu0 0
        %2725 = vmatpush1.bf16.msra.mxu0 %v2690
        %2726 = vmatprep.subr.bf16.mxu0 0
        %2727 = vmatpush1.bf16.msra.mxu0 %v2689
        %2728 = vmatprep.subr.bf16.mxu0 0
        %2729 = vmatpush1.bf16.msra.mxu0 %v2688
        %2730 = vmatprep.subr.bf16.mxu0 0
        %2731 = vmatpush1.bf16.msra.mxu0 %v2687
        %2732 = vmatprep.subr.bf16.mxu0 0
        %2733 = vmatpush1.bf16.msra.mxu0 %v2686
        %2734 = vmatprep.subr.bf16.mxu0 0
        %2735 = vmatpush2.bf16.msra.mxu0 %v2701
        %2736 = vmatprep.subr.bf16.mxu0 0
        %2737 = vmatpush2.bf16.msra.mxu0 %v2700
        %2738 = vmatprep.subr.bf16.mxu0 0
        %2739 = vmatpush2.bf16.msra.mxu0 %v2699
        %2740 = vmatprep.subr.bf16.mxu0 0
        %2741 = vmatpush2.bf16.msra.mxu0 %v2698
        %2742 = vmatprep.subr.bf16.mxu0 0
        %2743 = vmatpush2.bf16.msra.mxu0 %v2697
        %2744 = vmatprep.subr.bf16.mxu0 0
        %2745 = vmatpush2.bf16.msra.mxu0 %v2696
        %2746 = vmatprep.subr.bf16.mxu0 0
        %2747 = vmatpush2.bf16.msra.mxu0 %v2695
        %2748 = vmatprep.subr.bf16.mxu0 0
        %2749 = vmatpush2.bf16.msra.mxu0 %v2694
        %2750 = vmatprep.mubr.bf16.mxu0 %v2582
        %2751 = vmatmul.mubr.bf16.gmra.mxu0 %v2581
        %v2752 = vpop.f32.mrf.mxu0
        %v2753 = vadd.f32 %v2620, %v2752
        %v2754 = vpop.f32.mrf.mxu0
        %v2755 = vpop.f32.mrf.mxu0
        %v2756 = vadd.f32 %v2620, %v2755
        %v2757 = vpop.f32.mrf.mxu0
        %2758 = vdwg.mxu0
        %v2759 = vmax.f32 %v2753, 0.0
        %v2760 = vmax.f32 %v2756, 0.0
        %v2761 = vpack.c.bf16 %v2760, %v2759
        %v2762 = vld [vmem:[#allocation11] sm:$0xf]
        %v2763 = vld [vmem:[#allocation11 + $0x4] sm:$0xf]
        %v2764 = vld [vmem:[#allocation11 + $0x8] sm:$0xf]
        %v2765 = vld [vmem:[#allocation11 + $0xc] sm:$0xf]
        %v2766 = vld [vmem:[#allocation11 + $0x10] sm:$0xf]
        %v2767 = vld [vmem:[#allocation11 + $0x14] sm:$0xf]
        %v2768 = vld [vmem:[#allocation11 + $0x18] sm:$0xf]
        %v2769 = vld [vmem:[#allocation11 + $0x1c] sm:$0xf]
        %v2770 = vld [vmem:[#allocation11 + $0x20] sm:$0xf]
        %v2771 = vld [vmem:[#allocation11 + $0x24] sm:$0xf]
        %v2772 = vld [vmem:[#allocation11 + $0x28] sm:$0xf]
        %v2773 = vld [vmem:[#allocation11 + $0x2c] sm:$0xf]
        %v2774 = vld [vmem:[#allocation11 + $0x30] sm:$0xf]
        %v2775 = vld [vmem:[#allocation11 + $0x34] sm:$0xf]
        %v2776 = vld [vmem:[#allocation11 + $0x38] sm:$0xf]
        %v2777 = vld [vmem:[#allocation11 + $0x3c] sm:$0xf]
        %v2778 = vld [vmem:[%s8] sm:$0x1]
        %v2780 = vlaneseq
        %v2781 = vshrl.u32 %v2780, 7
        %v2782 = vsub.s32 0, %v2781
        %v2783 = vrot.slane %v2778, %v2782
        %v2801 = vunpack.c.l.b16 %v2762
        %v2802 = vunpack.c.l.b16 %v2763
        %v2803 = vunpack.c.l.b16 %v2764
        %v2804 = vunpack.c.l.b16 %v2765
        %v2805 = vunpack.c.l.b16 %v2766
        %v2806 = vunpack.c.l.b16 %v2767
        %v2807 = vunpack.c.l.b16 %v2768
        %v2808 = vunpack.c.l.b16 %v2769
        %v2809 = vunpack.c.l.b16 %v2770
        %v2810 = vunpack.c.l.b16 %v2771
        %v2811 = vunpack.c.l.b16 %v2772
        %v2812 = vunpack.c.l.b16 %v2773
        %v2813 = vunpack.c.l.b16 %v2774
        %v2814 = vunpack.c.l.b16 %v2775
        %v2815 = vunpack.c.l.b16 %v2776
        %v2816 = vunpack.c.l.b16 %v2777
        %v2817 = vpack.c.b16 %v2802, %v2801
        %v2818 = vpack.c.b16 %v2804, %v2803
        %v2819 = vpack.c.b16 %v2806, %v2805
        %v2820 = vpack.c.b16 %v2808, %v2807
        %v2821 = vpack.c.b16 %v2810, %v2809
        %v2822 = vpack.c.b16 %v2812, %v2811
        %v2823 = vpack.c.b16 %v2814, %v2813
        %v2824 = vpack.c.b16 %v2816, %v2815
        %2833 = vmatprep.subr.bf16.mxu0 0
        %2834 = vmatpush1.bf16.msra.mxu0 %v2824
        %2835 = vmatprep.subr.bf16.mxu0 0
        %2836 = vmatpush1.bf16.msra.mxu0 %v2823
        %2837 = vmatprep.subr.bf16.mxu0 0
        %2838 = vmatpush1.bf16.msra.mxu0 %v2822
        %2839 = vmatprep.subr.bf16.mxu0 0
        %2840 = vmatpush1.bf16.msra.mxu0 %v2821
        %2841 = vmatprep.subr.bf16.mxu0 0
        %2842 = vmatpush1.bf16.msra.mxu0 %v2820
        %2843 = vmatprep.subr.bf16.mxu0 0
        %2844 = vmatpush1.bf16.msra.mxu0 %v2819
        %2845 = vmatprep.subr.bf16.mxu0 0
        %2846 = vmatpush1.bf16.msra.mxu0 %v2818
        %2847 = vmatprep.subr.bf16.mxu0 0
        %2848 = vmatpush1.bf16.msra.mxu0 %v2817
        %2849 = vmatprep.subr.bf16.mxu0 0
        %2850 = vmatpush2.bf16.msra.mxu0 0
        %2851 = vmatprep.subr.bf16.mxu0 0
        %2852 = vmatpush2.bf16.msra.mxu0 0
        %2853 = vmatprep.subr.bf16.mxu0 0
        %2854 = vmatpush2.bf16.msra.mxu0 0
        %2855 = vmatprep.subr.bf16.mxu0 0
        %2856 = vmatpush2.bf16.msra.mxu0 0
        %2857 = vmatprep.subr.bf16.mxu0 0
        %2858 = vmatpush2.bf16.msra.mxu0 0
        %2859 = vmatprep.subr.bf16.mxu0 0
        %2860 = vmatpush2.bf16.msra.mxu0 0
        %2861 = vmatprep.subr.bf16.mxu0 0
        %2862 = vmatpush2.bf16.msra.mxu0 0
        %2863 = vmatprep.subr.bf16.mxu0 0
        %2864 = vmatpush2.bf16.msra.mxu0 0
        %2865 = vmatprep.mubr.bf16.mxu0 0
        %2866 = vmatmul.mubr.bf16.gmra.mxu0 %v2761
        %v2867 = vpop.f32.mrf.mxu0
        %v2868 = vadd.f32 %v2783, %v2867
        %v2869 = vpop.f32.mrf.mxu0
        %v2870 = vpop.f32.mrf.mxu0
        %v2871 = vadd.f32 %v2783, %v2870
        %v2872 = vpop.f32.mrf.mxu0
        %2873 = vdwg.mxu0
        %v2874 = vmax.f32 %v2868, 0.0
        %v2875 = vmax.f32 %v2871, 0.0
        %v2876 = vpack.c.bf16 %v2875, %v2874
        %v2877 = vld [vmem:[#allocation13] sm:$0xf]
        %v2878 = vld [vmem:[#allocation13 + $0x4] sm:$0xf]
        %v2879 = vld [vmem:[#allocation13 + $0x8] sm:$0xf]
        %v2880 = vld [vmem:[#allocation13 + $0xc] sm:$0xf]
        %v2881 = vld [vmem:[#allocation13 + $0x10] sm:$0xf]
        %v2882 = vld [vmem:[#allocation13 + $0x14] sm:$0xf]
        %v2883 = vld [vmem:[#allocation13 + $0x18] sm:$0xf]
        %v2884 = vld [vmem:[#allocation13 + $0x1c] sm:$0xf]
        %v2885 = vld [vmem:[#allocation13 + $0x20] sm:$0xf]
        %v2886 = vld [vmem:[#allocation13 + $0x24] sm:$0xf]
        %v2887 = vld [vmem:[#allocation13 + $0x28] sm:$0xf]
        %v2888 = vld [vmem:[#allocation13 + $0x2c] sm:$0xf]
        %v2889 = vld [vmem:[#allocation13 + $0x30] sm:$0xf]
        %v2890 = vld [vmem:[#allocation13 + $0x34] sm:$0xf]
        %v2891 = vld [vmem:[#allocation13 + $0x38] sm:$0xf]
        %v2892 = vld [vmem:[#allocation13 + $0x3c] sm:$0xf]
        %v2893 = vld [vmem:[%s10] sm:$0x1]
        %v2895 = vlaneseq
        %v2896 = vshrl.u32 %v2895, 7
        %v2897 = vsub.s32 0, %v2896
        %v2898 = vrot.slane %v2893, %v2897
        %v2916 = vunpack.c.l.b16 %v2877
        %v2917 = vunpack.c.l.b16 %v2878
        %v2918 = vunpack.c.l.b16 %v2879
        %v2919 = vunpack.c.l.b16 %v2880
        %v2920 = vunpack.c.l.b16 %v2881
        %v2921 = vunpack.c.l.b16 %v2882
        %v2922 = vunpack.c.l.b16 %v2883
        %v2923 = vunpack.c.l.b16 %v2884
        %v2924 = vunpack.c.l.b16 %v2885
        %v2925 = vunpack.c.l.b16 %v2886
        %v2926 = vunpack.c.l.b16 %v2887
        %v2927 = vunpack.c.l.b16 %v2888
        %v2928 = vunpack.c.l.b16 %v2889
        %v2929 = vunpack.c.l.b16 %v2890
        %v2930 = vunpack.c.l.b16 %v2891
        %v2931 = vunpack.c.l.b16 %v2892
        %v2932 = vpack.c.b16 %v2917, %v2916
        %v2933 = vpack.c.b16 %v2919, %v2918
        %v2934 = vpack.c.b16 %v2921, %v2920
        %v2935 = vpack.c.b16 %v2923, %v2922
        %v2936 = vpack.c.b16 %v2925, %v2924
        %v2937 = vpack.c.b16 %v2927, %v2926
        %v2938 = vpack.c.b16 %v2929, %v2928
        %v2939 = vpack.c.b16 %v2931, %v2930
        %2948 = vmatprep.subr.bf16.mxu0 0
        %2949 = vmatpush1.bf16.msra.mxu0 %v2939
        %2950 = vmatprep.subr.bf16.mxu0 0
        %2951 = vmatpush1.bf16.msra.mxu0 %v2938
        %2952 = vmatprep.subr.bf16.mxu0 0
        %2953 = vmatpush1.bf16.msra.mxu0 %v2937
        %2954 = vmatprep.subr.bf16.mxu0 0
        %2955 = vmatpush1.bf16.msra.mxu0 %v2936
        %2956 = vmatprep.subr.bf16.mxu0 0
        %2957 = vmatpush1.bf16.msra.mxu0 %v2935
        %2958 = vmatprep.subr.bf16.mxu0 0
        %2959 = vmatpush1.bf16.msra.mxu0 %v2934
        %2960 = vmatprep.subr.bf16.mxu0 0
        %2961 = vmatpush1.bf16.msra.mxu0 %v2933
        %2962 = vmatprep.subr.bf16.mxu0 0
        %2963 = vmatpush1.bf16.msra.mxu0 %v2932
        %2964 = vmatprep.subr.bf16.mxu0 0
        %2965 = vmatpush2.bf16.msra.mxu0 0
        %2966 = vmatprep.subr.bf16.mxu0 0
        %2967 = vmatpush2.bf16.msra.mxu0 0
        %2968 = vmatprep.subr.bf16.mxu0 0
        %2969 = vmatpush2.bf16.msra.mxu0 0
        %2970 = vmatprep.subr.bf16.mxu0 0
        %2971 = vmatpush2.bf16.msra.mxu0 0
        %2972 = vmatprep.subr.bf16.mxu0 0
        %2973 = vmatpush2.bf16.msra.mxu0 0
        %2974 = vmatprep.subr.bf16.mxu0 0
        %2975 = vmatpush2.bf16.msra.mxu0 0
        %2976 = vmatprep.subr.bf16.mxu0 0
        %2977 = vmatpush2.bf16.msra.mxu0 0
        %2978 = vmatprep.subr.bf16.mxu0 0
        %2979 = vmatpush2.bf16.msra.mxu0 0
        %2980 = vmatprep.mubr.bf16.mxu0 0
        %2981 = vmatmul.mubr.bf16.gmra.mxu0 %v2876
        %v2982 = vpop.f32.mrf.mxu0
        %v2983 = vadd.f32 %v2898, %v2982
        %v2984 = vpop.f32.mrf.mxu0
        %v2985 = vpop.f32.mrf.mxu0
        %v2986 = vadd.f32 %v2898, %v2985
        %v2987 = vpop.f32.mrf.mxu0
        %2988 = vdwg.mxu0
        %v2989 = vpack.c.bf16 %v2986, %v2983
        %v2991 = vunpack.c.l.b16 %v2989
        %v2992 = vunpack.c.h.b16 %v2989
        %v2993 = vpack.c.b16 %v2991, %v2991
        %v2994 = vpack.c.b16 %v2992, %v2992
        %2997 = vst [vmem:[%s490] sm:$0xf] %v2993
        %2998 = vst [vmem:[%s490 + $0x4] sm:$0xf] %v2994
        %s2999 = sand.u32 %s275, 1
        %s3000 = scalar_lea.sflag [#allocation4], %s2999
        %s3001 = sand.u32 %s275, 1
        %s3002 = smul.addr %s3001, 8
        %s3003 = scalar_lea.vmem [#allocation14], %s3002
        // Predicated region
        $region93: #{tpu_custom_call.1} parent=63 // pred_check
          %p3004 = pneg %p285
        $region94: #{tpu_custom_call.1} parent=63 // pred_check_branch
          %3006 = sbr.rel (%p3004) target = $region96
        $region95: #{tpu_custom_call.1} parent=63 // pred_region
          %s3007 = smul.u32 2, %s31
          %s3009 = ssub.s32 128, 128
          %3010 = vsyncadd %s3000, %s3009
          %s3011 = smul.addr %s3007, 64
          %s3012 = scalar_lea.hbm %s11, %s3011
          %s3013 = sshll.u32 %s3003, 4
          %s3014 = int_to_ptr.vmem [resolvable:$true] %s3013
          %3019 = dma.vmem_to_hbm [thread:$0]  %s3014, 128, %s3012, %s3000, 64, 64, 4
        $region96: #{tpu_custom_call.1} parent=63 // pred_fallthru
          _
      $region64: #{tpu_custom_call.1} parent=5 // pred_fallthru
        _
      %p3020 = scmp.le.s32.totalorder 2, %s26
      // Predicated region
      $region97: #{tpu_custom_call.1} parent=5 // pred_check
        %p3021 = pneg %p3020
      $region98: #{tpu_custom_call.1} parent=5 // pred_check_branch
        %3023 = sbr.rel (%p3021) target = $region100
      $region99: #{tpu_custom_call.1} parent=5 // pred_region
        %s3024 = ssub.s32 %s26, 2
        // Predicated region
        $region101: #{tpu_custom_call.1} parent=99 // pred_check
          %p3025 = pneg %p291
        $region102: #{tpu_custom_call.1} parent=99 // pred_check_branch
          %3027 = sbr.rel (%p3025) target = $region104
        $region103: #{tpu_custom_call.1} parent=99 // pred_region
          %s3028 = sand.u32 %s276, 1
          %s3029 = scalar_lea.sflag [#allocation4], %s3028
          %s3030 = sand.u32 %s276, 1
          %s3031 = smul.addr %s3030, 8
          %s3032 = scalar_lea.vmem [#allocation14], %s3031
          %3033 = dma.done %s3029, 128
        $region104: #{tpu_custom_call.1} parent=99 // pred_fallthru
          _
      $region100: #{tpu_custom_call.1} parent=5 // pred_fallthru
        _
    $region6: #{tpu_custom_call.1} parent=1 // loop_footer
      %s30 = sadd.s32 1, %s26
    $region7: #{tpu_custom_call.1} parent=1 // loop_footer_branch
      %25 = sbr.rel target = $region3
    $region8: #{tpu_custom_call.1} parent=1 // loop_exit
      _
    %3034 = vsyncpa [#allocation3], 1
    %s3035 = scalar_lea.sflag [#allocation3], 1
    %3036 = vsyncpa %s3035, 1
    %3037 = vsyncpa [#allocation6], 1
    %3038 = vsyncpa [#allocation9], 1
    %3039 = vsyncpa [#allocation12], 1
    %3040 = vsyncpa [#allocation4], 1
    %s3041 = scalar_lea.sflag [#allocation4], 1
    %3042 = vsyncpa %s3041, 1

</llo_original>
